<compile_context>
chip_gen: v5e
topology: v5e:2x2
jax: 0.10.0
libtpu: 0.0.40
codegen_flags: <defaults>
</compile_context>

<pallas_src>
import jax
import jax.numpy as jnp
from jax.experimental import pallas as pl
from jax.experimental.pallas import tpu as pltpu

EPS = 1e-5


def _round_up(x, m):
    return (x + m - 1) // m * m


# -----------------------------------------------------------------------------
# Fused Pallas kernel (built per static shape)
# -----------------------------------------------------------------------------
def _make_block_kernel(C, Wp, MC, PAD, n_valid):
    # tap t = kh*3 + kw  ->  lane offset inside the flattened padded image
    offsets = [(kh - 1) * Wp + (kw - 1) for kh in range(3) for kw in range(3)]
    inv_n = 1.0 / float(n_valid)

    def kernel(x_ref, mask_ref, w1_ref, w2_ref, gamma_ref, beta_ref,
               o_ref, taps_ref, h_ref):
        mask = mask_ref[...]        # (1, MC): 1.0 at real output pixels
        gamma = gamma_ref[...]      # (C, 1)
        beta = beta_ref[...]        # (C, 1)

        def conv_bn(src_ref, w_ref):
            # Gather the 9 shifted views into a (9*C, MC) taps matrix in VMEM.
            for t, off in enumerate(offsets):
                taps_ref[t * C:(t + 1) * C, :] = \
                    src_ref[:, PAD + off: PAD + off + MC]
            # Single K=9*C f32 MXU matmul, f32 accumulation.
            acc = jnp.dot(w_ref[...], taps_ref[...],
                          preferred_element_type=jnp.float32)      # (C, MC) f32
            # Training-mode BatchNorm over the valid positions only (masked).
            mean = jnp.sum(acc * mask, axis=-1, keepdims=True) * inv_n
            d = acc - mean
            var = jnp.sum(d * d * mask, axis=-1, keepdims=True) * inv_n
            scale = gamma * jax.lax.rsqrt(var + EPS)
            bias = beta - mean * scale
            return acc * scale + bias                               # fused FMA

        # Stage 1: h = relu(batch_norm2(conv1(x))); re-zero the padding ring so
        # conv2 sees a properly zero-padded input (halos zeroed explicitly).
        h = jnp.maximum(conv_bn(x_ref, w1_ref), 0.0) * mask
        h_ref[:, :PAD] = jnp.zeros((C, PAD), jnp.float32)
        h_ref[:, PAD + MC:] = jnp.zeros((C, PAD), jnp.float32)
        h_ref[:, PAD:PAD + MC] = h

        # Stage 2: out = relu(batch_norm2(conv2(h)) + shortcut)   (f32 shortcut)
        y = conv_bn(h_ref, w2_ref)
        o_ref[...] = jnp.maximum(y + x_ref[:, PAD:PAD + MC], 0.0)

    return kernel


# -----------------------------------------------------------------------------
# Wrapper (plain JAX glue: layout, padding, weight reshape)
# -----------------------------------------------------------------------------
def _weights_to_matrix(w_oihw):
    """(Cout, Cin, 3, 3) -> (Cout, 9*Cin) f32, column = (kh*3+kw)*Cin + cin."""
    co, ci = w_oihw.shape[0], w_oihw.shape[1]
    return (jnp.transpose(w_oihw, (2, 3, 1, 0))
            .reshape(9 * ci, co).T.astype(jnp.float32))


@jax.jit
def block_forward(x_nchw, w1_oihw, w2_oihw, gamma2, beta2):
    """Pallas implementation of Block.forward (stride=1, i_downsample=None)."""
    N, C, H, W = x_nchw.shape
    assert w1_oihw.shape[0] == C and w2_oihw.shape[0] == C  # in_ch == out_ch

    Hp, Wp = H + 2, W + 2
    Mp = N * Hp * Wp                    # number of padded-grid positions computed
    MC = _round_up(Mp, 128)             # lane-dense compute / output width
    PAD = _round_up(Wp + 1, 128)        # lane halo >= largest tap offset
    L = PAD + MC + PAD

    # Channels on sublanes, flattened zero-padded spatial on lanes.
    # (One transpose + one pad; NO 9x im2col blowup in HBM.)
    x_c = jnp.transpose(x_nchw.astype(jnp.float32), (1, 0, 2, 3))   # (C,N,H,W)
    x_p = jnp.pad(x_c, ((0, 0), (0, 0), (1, 1), (1, 1))).reshape(C, Mp)
    x_flat = jnp.pad(x_p, ((0, 0), (PAD, L - PAD - Mp)))            # (C, L)

    # Validity mask over the MC computed positions.
    mask = jnp.pad(jnp.ones((N, H, W), jnp.float32),
                   ((0, 0), (1, 1), (1, 1))).reshape(1, Mp)
    mask = jnp.pad(mask, ((0, 0), (0, MC - Mp)))                    # (1, MC)

    # Weights / affine params (in a real model, pre-transform these once).
    w1m = _weights_to_matrix(w1_oihw)                               # (C, 9C) f32
    w2m = _weights_to_matrix(w2_oihw)
    g = gamma2.reshape(C, 1).astype(jnp.float32)
    b = beta2.reshape(C, 1).astype(jnp.float32)

    kernel = _make_block_kernel(C, Wp, MC, PAD, n_valid=N * H * W)
    vmem = pl.BlockSpec(memory_space=pltpu.MemorySpace.VMEM)
    out2d = pl.pallas_call(
        kernel,
        out_shape=jax.ShapeDtypeStruct((C, MC), jnp.float32),
        in_specs=[vmem] * 6,
        out_specs=vmem,
        scratch_shapes=[pltpu.VMEM((9 * C, MC), jnp.float32),   # shared taps buf
                        pltpu.VMEM((C, L), jnp.float32)],       # intermediate h
    )(x_flat, mask, w1m, w2m, g, b)

    # Drop the ring / lane-tail positions and restore NCHW.
    out = out2d[:, :Mp].reshape(C, N, Hp, Wp)[:, :, 1:H + 1, 1:W + 1]
    return jnp.transpose(out, (1, 0, 2, 3))


# -----------------------------------------------------------------------------
# Pure-JAX f32 reference (mirrors the PyTorch forward exactly)
# -----------------------------------------------------------------------------
def block_forward_ref(x, w1, w2, gamma2, beta2):
    def conv(x, w):
        return jax.lax.conv_general_dilated(
            x, w, window_strides=(1, 1), padding=((1, 1), (1, 1)),
            dimension_numbers=("NCHW", "OIHW", "NCHW"))

    def bn_train(x, g, b):
        mean = jnp.mean(x, axis=(0, 2, 3), keepdims=True)
        var = jnp.mean((x - mean) ** 2, axis=(0, 2, 3), keepdims=True)
        xn = (x - mean) * jax.lax.rsqrt(var + EPS)
        return xn * g.reshape(1, -1, 1, 1) + b.reshape(1, -1, 1, 1)

    shortcut = x
    h = jax.nn.relu(bn_train(conv(x, w1), gamma2, beta2))
    h = bn_train(conv(h, w2), gamma2, beta2)
    return jax.nn.relu(h + shortcut)


# -----------------------------------------------------------------------------
# Main
# -----------------------------------------------------------------------------
if __name__ == "__main__":
    key = jax.random.PRNGKey(0)
    kx, k1, k2, kg, kb = jax.random.split(key, 5)

    N, C, H, W = 2, 8, 16, 16   # in_channels == out_channels (i_downsample=None)
    x = jax.random.normal(kx, (N, C, H, W), dtype=jnp.float32)

    # conv1 / conv2 weights: (out_channels, in_channels, 3, 3), bias=False
    w1 = jax.random.normal(k1, (C, C, 3, 3), dtype=jnp.float32) * 0.1
    w2 = jax.random.normal(k2, (C, C, 3, 3), dtype=jnp.float32) * 0.1
    # batch_norm2 affine params (batch_norm1 is defined but never used in forward)
    gamma2 = 1.0 + 0.1 * jax.random.normal(kg, (C,), dtype=jnp.float32)
    beta2 = 0.1 * jax.random.normal(kb, (C,), dtype=jnp.float32)

    out = jax.block_until_ready(block_forward(x, w1, w2, gamma2, beta2))
    ref = block_forward_ref(x, w1, w2, gamma2, beta2)

    assert out.shape == (N, C, H, W), out.shape
    # Matmuls accumulate in f32; allow a small tolerance for MXU pass rounding.
    assert jnp.allclose(out, ref, rtol=2e-2, atol=2e-2), \
        float(jnp.max(jnp.abs(out - ref)))

    print("KERNEL_OK")
</pallas_src>

<mosaic_0001>
module attributes {stable_mosaic.version = 11 : i64} {
  func.func @kernel(%arg0: memref<8x1024xf32, #tpu.memory_space<vmem>>, %arg1: memref<1x768xf32, #tpu.memory_space<vmem>>, %arg2: memref<8x72xf32, #tpu.memory_space<vmem>>, %arg3: memref<8x72xf32, #tpu.memory_space<vmem>>, %arg4: memref<8x1xf32, #tpu.memory_space<vmem>>, %arg5: memref<8x1xf32, #tpu.memory_space<vmem>>, %arg6: memref<8x768xf32, #tpu.memory_space<vmem>>, %arg7: memref<72x768xf32, #tpu.memory_space<vmem>>, %arg8: memref<8x1024xf32, #tpu.memory_space<vmem>>) attributes {dimension_semantics = [], scalar_prefetch = 0 : i64, scratch_operands = 2 : i64, tpu.core_type = #tpu.core_type<tc>} {
    %c0 = arith.constant 0 : index
    %c0_0 = arith.constant 0 : index
    %0 = vector.load %arg1[%c0, %c0_0] : memref<1x768xf32, #tpu.memory_space<vmem>>, vector<1x768xf32>
    %c0_1 = arith.constant 0 : index
    %c0_2 = arith.constant 0 : index
    %1 = vector.load %arg4[%c0_1, %c0_2] : memref<8x1xf32, #tpu.memory_space<vmem>>, vector<8x1xf32>
    %c0_3 = arith.constant 0 : index
    %c0_4 = arith.constant 0 : index
    %2 = vector.load %arg5[%c0_3, %c0_4] : memref<8x1xf32, #tpu.memory_space<vmem>>, vector<8x1xf32>
    %c0_5 = arith.constant 0 : index
    %c109 = arith.constant 109 : index
    %3 = vector.load %arg0[%c0_5, %c109] : memref<8x1024xf32, #tpu.memory_space<vmem>>, vector<8x768xf32>
    %c0_6 = arith.constant 0 : index
    %c0_7 = arith.constant 0 : index
    %4 = vector.load %arg7[%c0_6, %c0_7] : memref<72x768xf32, #tpu.memory_space<vmem>>, vector<8x768xf32>
    tpu.vector_store %arg7[%c0_6, %c0_7], %3 {strides = array<i32>} : memref<72x768xf32, #tpu.memory_space<vmem>>, vector<8x768xf32>,
    %c0_8 = arith.constant 0 : index
    %c110 = arith.constant 110 : index
    %5 = vector.load %arg0[%c0_8, %c110] : memref<8x1024xf32, #tpu.memory_space<vmem>>, vector<8x768xf32>
    %c8 = arith.constant 8 : index
    %c0_9 = arith.constant 0 : index
    %6 = vector.load %arg7[%c8, %c0_9] : memref<72x768xf32, #tpu.memory_space<vmem>>, vector<8x768xf32>
    tpu.vector_store %arg7[%c8, %c0_9], %5 {strides = array<i32>} : memref<72x768xf32, #tpu.memory_space<vmem>>, vector<8x768xf32>,
    %c0_10 = arith.constant 0 : index
    %c111 = arith.constant 111 : index
    %7 = vector.load %arg0[%c0_10, %c111] : memref<8x1024xf32, #tpu.memory_space<vmem>>, vector<8x768xf32>
    %c16 = arith.constant 16 : index
    %c0_11 = arith.constant 0 : index
    %8 = vector.load %arg7[%c16, %c0_11] : memref<72x768xf32, #tpu.memory_space<vmem>>, vector<8x768xf32>
    tpu.vector_store %arg7[%c16, %c0_11], %7 {strides = array<i32>} : memref<72x768xf32, #tpu.memory_space<vmem>>, vector<8x768xf32>,
    %c0_12 = arith.constant 0 : index
    %c127 = arith.constant 127 : index
    %9 = vector.load %arg0[%c0_12, %c127] : memref<8x1024xf32, #tpu.memory_space<vmem>>, vector<8x768xf32>
    %c24 = arith.constant 24 : index
    %c0_13 = arith.constant 0 : index
    %10 = vector.load %arg7[%c24, %c0_13] : memref<72x768xf32, #tpu.memory_space<vmem>>, vector<8x768xf32>
    tpu.vector_store %arg7[%c24, %c0_13], %9 {strides = array<i32>} : memref<72x768xf32, #tpu.memory_space<vmem>>, vector<8x768xf32>,
    %c0_14 = arith.constant 0 : index
    %c128 = arith.constant 128 : index
    %11 = vector.load %arg0[%c0_14, %c128] : memref<8x1024xf32, #tpu.memory_space<vmem>>, vector<8x768xf32>
    %c32 = arith.constant 32 : index
    %c0_15 = arith.constant 0 : index
    %12 = vector.load %arg7[%c32, %c0_15] : memref<72x768xf32, #tpu.memory_space<vmem>>, vector<8x768xf32>
    tpu.vector_store %arg7[%c32, %c0_15], %11 {strides = array<i32>} : memref<72x768xf32, #tpu.memory_space<vmem>>, vector<8x768xf32>,
    %c0_16 = arith.constant 0 : index
    %c129 = arith.constant 129 : index
    %13 = vector.load %arg0[%c0_16, %c129] : memref<8x1024xf32, #tpu.memory_space<vmem>>, vector<8x768xf32>
    %c40 = arith.constant 40 : index
    %c0_17 = arith.constant 0 : index
    %14 = vector.load %arg7[%c40, %c0_17] : memref<72x768xf32, #tpu.memory_space<vmem>>, vector<8x768xf32>
    tpu.vector_store %arg7[%c40, %c0_17], %13 {strides = array<i32>} : memref<72x768xf32, #tpu.memory_space<vmem>>, vector<8x768xf32>,
    %c0_18 = arith.constant 0 : index
    %c145 = arith.constant 145 : index
    %15 = vector.load %arg0[%c0_18, %c145] : memref<8x1024xf32, #tpu.memory_space<vmem>>, vector<8x768xf32>
    %c48 = arith.constant 48 : index
    %c0_19 = arith.constant 0 : index
    %16 = vector.load %arg7[%c48, %c0_19] : memref<72x768xf32, #tpu.memory_space<vmem>>, vector<8x768xf32>
    tpu.vector_store %arg7[%c48, %c0_19], %15 {strides = array<i32>} : memref<72x768xf32, #tpu.memory_space<vmem>>, vector<8x768xf32>,
    %c0_20 = arith.constant 0 : index
    %c146 = arith.constant 146 : index
    %17 = vector.load %arg0[%c0_20, %c146] : memref<8x1024xf32, #tpu.memory_space<vmem>>, vector<8x768xf32>
    %c56 = arith.constant 56 : index
    %c0_21 = arith.constant 0 : index
    %18 = vector.load %arg7[%c56, %c0_21] : memref<72x768xf32, #tpu.memory_space<vmem>>, vector<8x768xf32>
    tpu.vector_store %arg7[%c56, %c0_21], %17 {strides = array<i32>} : memref<72x768xf32, #tpu.memory_space<vmem>>, vector<8x768xf32>,
    %c0_22 = arith.constant 0 : index
    %c147 = arith.constant 147 : index
    %19 = vector.load %arg0[%c0_22, %c147] : memref<8x1024xf32, #tpu.memory_space<vmem>>, vector<8x768xf32>
    %c64 = arith.constant 64 : index
    %c0_23 = arith.constant 0 : index
    %20 = vector.load %arg7[%c64, %c0_23] : memref<72x768xf32, #tpu.memory_space<vmem>>, vector<8x768xf32>
    tpu.vector_store %arg7[%c64, %c0_23], %19 {strides = array<i32>} : memref<72x768xf32, #tpu.memory_space<vmem>>, vector<8x768xf32>,
    %c0_24 = arith.constant 0 : index
    %c0_25 = arith.constant 0 : index
    %21 = vector.load %arg2[%c0_24, %c0_25] : memref<8x72xf32, #tpu.memory_space<vmem>>, vector<8x72xf32>
    %c0_26 = arith.constant 0 : index
    %c0_27 = arith.constant 0 : index
    %22 = vector.load %arg7[%c0_26, %c0_27] : memref<72x768xf32, #tpu.memory_space<vmem>>, vector<72x768xf32>
    %cst = arith.constant dense<0.000000e+00> : vector<8x768xf32>
    %23 = tpu.matmul %21, %22, %cst {dimension_numbers = #tpu.dot_dimension_numbers<[1], [0], [0], [1], [0, 0, 1, 1], [], []>} : vector<8x72xf32>, vector<72x768xf32>, vector<8x768xf32> -> vector<8x768xf32>
    %24 = vector.broadcast %0 : vector<1x768xf32> to vector<8x768xf32>
    %25 = arith.mulf %23, %24 : vector<8x768xf32>
    %cst_28 = arith.constant dense<0.000000e+00> : vector<8xf32>
    %26 = vector.multi_reduction <add>, %25, %cst_28 [1] : vector<8x768xf32> to vector<8xf32>
    %27 = vector.shape_cast %26 : vector<8xf32> to vector<8x1xf32>
    %cst_29 = arith.constant 0.001953125 : f32
    %28 = vector.broadcast %cst_29 : f32 to vector<8x1xf32>
    %29 = arith.mulf %27, %28 : vector<8x1xf32>
    %30 = vector.broadcast %29 : vector<8x1xf32> to vector<8x768xf32>
    %31 = arith.subf %23, %30 : vector<8x768xf32>
    %32 = arith.mulf %31, %31 : vector<8x768xf32>
    %33 = vector.broadcast %0 : vector<1x768xf32> to vector<8x768xf32>
    %34 = arith.mulf %32, %33 : vector<8x768xf32>
    %cst_30 = arith.constant dense<0.000000e+00> : vector<8xf32>
    %35 = vector.multi_reduction <add>, %34, %cst_30 [1] : vector<8x768xf32> to vector<8xf32>
    %36 = vector.shape_cast %35 : vector<8xf32> to vector<8x1xf32>
    %cst_31 = arith.constant 0.001953125 : f32
    %37 = vector.broadcast %cst_31 : f32 to vector<8x1xf32>
    %38 = arith.mulf %36, %37 : vector<8x1xf32>
    %cst_32 = arith.constant 9.99999974E-6 : f32
    %39 = vector.broadcast %cst_32 : f32 to vector<8x1xf32>
    %40 = arith.addf %38, %39 : vector<8x1xf32>
    %41 = math.rsqrt %40 : vector<8x1xf32>
    %42 = arith.mulf %1, %41 : vector<8x1xf32>
    %43 = arith.mulf %29, %42 : vector<8x1xf32>
    %44 = arith.subf %2, %43 : vector<8x1xf32>
    %45 = vector.broadcast %42 : vector<8x1xf32> to vector<8x768xf32>
    %46 = arith.mulf %23, %45 : vector<8x768xf32>
    %47 = vector.broadcast %44 : vector<8x1xf32> to vector<8x768xf32>
    %48 = arith.addf %46, %47 : vector<8x768xf32>
    %cst_33 = arith.constant 0.000000e+00 : f32
    %49 = vector.broadcast %cst_33 : f32 to vector<8x768xf32>
    %50 = arith.maximumf %48, %49 : vector<8x768xf32>
    %51 = vector.broadcast %0 : vector<1x768xf32> to vector<8x768xf32>
    %52 = arith.mulf %50, %51 : vector<8x768xf32>
    %cst_34 = arith.constant 0.000000e+00 : f32
    %53 = vector.broadcast %cst_34 : f32 to vector<8x128xf32>
    %c0_35 = arith.constant 0 : index
    %c0_36 = arith.constant 0 : index
    %54 = vector.load %arg8[%c0_35, %c0_36] : memref<8x1024xf32, #tpu.memory_space<vmem>>, vector<8x128xf32>
    tpu.vector_store %arg8[%c0_35, %c0_36], %53 {strides = array<i32>} : memref<8x1024xf32, #tpu.memory_space<vmem>>, vector<8x128xf32>,
    %cst_37 = arith.constant 0.000000e+00 : f32
    %55 = vector.broadcast %cst_37 : f32 to vector<8x128xf32>
    %c0_38 = arith.constant 0 : index
    %c896 = arith.constant 896 : index
    %56 = vector.load %arg8[%c0_38, %c896] : memref<8x1024xf32, #tpu.memory_space<vmem>>, vector<8x128xf32>
    tpu.vector_store %arg8[%c0_38, %c896], %55 {strides = array<i32>} : memref<8x1024xf32, #tpu.memory_space<vmem>>, vector<8x128xf32>,
    %c0_39 = arith.constant 0 : index
    %c128_40 = arith.constant 128 : index
    %57 = vector.load %arg8[%c0_39, %c128_40] : memref<8x1024xf32, #tpu.memory_space<vmem>>, vector<8x768xf32>
    tpu.vector_store %arg8[%c0_39, %c128_40], %52 {strides = array<i32>} : memref<8x1024xf32, #tpu.memory_space<vmem>>, vector<8x768xf32>,
    %c0_41 = arith.constant 0 : index
    %c109_42 = arith.constant 109 : index
    %58 = vector.load %arg8[%c0_41, %c109_42] : memref<8x1024xf32, #tpu.memory_space<vmem>>, vector<8x768xf32>
    %c0_43 = arith.constant 0 : index
    %c0_44 = arith.constant 0 : index
    %59 = vector.load %arg7[%c0_43, %c0_44] : memref<72x768xf32, #tpu.memory_space<vmem>>, vector<8x768xf32>
    tpu.vector_store %arg7[%c0_43, %c0_44], %58 {strides = array<i32>} : memref<72x768xf32, #tpu.memory_space<vmem>>, vector<8x768xf32>,
    %c0_45 = arith.constant 0 : index
    %c110_46 = arith.constant 110 : index
    %60 = vector.load %arg8[%c0_45, %c110_46] : memref<8x1024xf32, #tpu.memory_space<vmem>>, vector<8x768xf32>
    %c8_47 = arith.constant 8 : index
    %c0_48 = arith.constant 0 : index
    %61 = vector.load %arg7[%c8_47, %c0_48] : memref<72x768xf32, #tpu.memory_space<vmem>>, vector<8x768xf32>
    tpu.vector_store %arg7[%c8_47, %c0_48], %60 {strides = array<i32>} : memref<72x768xf32, #tpu.memory_space<vmem>>, vector<8x768xf32>,
    %c0_49 = arith.constant 0 : index
    %c111_50 = arith.constant 111 : index
    %62 = vector.load %arg8[%c0_49, %c111_50] : memref<8x1024xf32, #tpu.memory_space<vmem>>, vector<8x768xf32>
    %c16_51 = arith.constant 16 : index
    %c0_52 = arith.constant 0 : index
    %63 = vector.load %arg7[%c16_51, %c0_52] : memref<72x768xf32, #tpu.memory_space<vmem>>, vector<8x768xf32>
    tpu.vector_store %arg7[%c16_51, %c0_52], %62 {strides = array<i32>} : memref<72x768xf32, #tpu.memory_space<vmem>>, vector<8x768xf32>,
    %c0_53 = arith.constant 0 : index
    %c127_54 = arith.constant 127 : index
    %64 = vector.load %arg8[%c0_53, %c127_54] : memref<8x1024xf32, #tpu.memory_space<vmem>>, vector<8x768xf32>
    %c24_55 = arith.constant 24 : index
    %c0_56 = arith.constant 0 : index
    %65 = vector.load %arg7[%c24_55, %c0_56] : memref<72x768xf32, #tpu.memory_space<vmem>>, vector<8x768xf32>
    tpu.vector_store %arg7[%c24_55, %c0_56], %64 {strides = array<i32>} : memref<72x768xf32, #tpu.memory_space<vmem>>, vector<8x768xf32>,
    %c0_57 = arith.constant 0 : index
    %c128_58 = arith.constant 128 : index
    %66 = vector.load %arg8[%c0_57, %c128_58] : memref<8x1024xf32, #tpu.memory_space<vmem>>, vector<8x768xf32>
    %c32_59 = arith.constant 32 : index
    %c0_60 = arith.constant 0 : index
    %67 = vector.load %arg7[%c32_59, %c0_60] : memref<72x768xf32, #tpu.memory_space<vmem>>, vector<8x768xf32>
    tpu.vector_store %arg7[%c32_59, %c0_60], %66 {strides = array<i32>} : memref<72x768xf32, #tpu.memory_space<vmem>>, vector<8x768xf32>,
    %c0_61 = arith.constant 0 : index
    %c129_62 = arith.constant 129 : index
    %68 = vector.load %arg8[%c0_61, %c129_62] : memref<8x1024xf32, #tpu.memory_space<vmem>>, vector<8x768xf32>
    %c40_63 = arith.constant 40 : index
    %c0_64 = arith.constant 0 : index
    %69 = vector.load %arg7[%c40_63, %c0_64] : memref<72x768xf32, #tpu.memory_space<vmem>>, vector<8x768xf32>
    tpu.vector_store %arg7[%c40_63, %c0_64], %68 {strides = array<i32>} : memref<72x768xf32, #tpu.memory_space<vmem>>, vector<8x768xf32>,
    %c0_65 = arith.constant 0 : index
    %c145_66 = arith.constant 145 : index
    %70 = vector.load %arg8[%c0_65, %c145_66] : memref<8x1024xf32, #tpu.memory_space<vmem>>, vector<8x768xf32>
    %c48_67 = arith.constant 48 : index
    %c0_68 = arith.constant 0 : index
    %71 = vector.load %arg7[%c48_67, %c0_68] : memref<72x768xf32, #tpu.memory_space<vmem>>, vector<8x768xf32>
    tpu.vector_store %arg7[%c48_67, %c0_68], %70 {strides = array<i32>} : memref<72x768xf32, #tpu.memory_space<vmem>>, vector<8x768xf32>,
    %c0_69 = arith.constant 0 : index
    %c146_70 = arith.constant 146 : index
    %72 = vector.load %arg8[%c0_69, %c146_70] : memref<8x1024xf32, #tpu.memory_space<vmem>>, vector<8x768xf32>
    %c56_71 = arith.constant 56 : index
    %c0_72 = arith.constant 0 : index
    %73 = vector.load %arg7[%c56_71, %c0_72] : memref<72x768xf32, #tpu.memory_space<vmem>>, vector<8x768xf32>
    tpu.vector_store %arg7[%c56_71, %c0_72], %72 {strides = array<i32>} : memref<72x768xf32, #tpu.memory_space<vmem>>, vector<8x768xf32>,
    %c0_73 = arith.constant 0 : index
    %c147_74 = arith.constant 147 : index
    %74 = vector.load %arg8[%c0_73, %c147_74] : memref<8x1024xf32, #tpu.memory_space<vmem>>, vector<8x768xf32>
    %c64_75 = arith.constant 64 : index
    %c0_76 = arith.constant 0 : index
    %75 = vector.load %arg7[%c64_75, %c0_76] : memref<72x768xf32, #tpu.memory_space<vmem>>, vector<8x768xf32>
    tpu.vector_store %arg7[%c64_75, %c0_76], %74 {strides = array<i32>} : memref<72x768xf32, #tpu.memory_space<vmem>>, vector<8x768xf32>,
    %c0_77 = arith.constant 0 : index
    %c0_78 = arith.constant 0 : index
    %76 = vector.load %arg3[%c0_77, %c0_78] : memref<8x72xf32, #tpu.memory_space<vmem>>, vector<8x72xf32>
    %c0_79 = arith.constant 0 : index
    %c0_80 = arith.constant 0 : index
    %77 = vector.load %arg7[%c0_79, %c0_80] : memref<72x768xf32, #tpu.memory_space<vmem>>, vector<72x768xf32>
    %cst_81 = arith.constant dense<0.000000e+00> : vector<8x768xf32>
    %78 = tpu.matmul %76, %77, %cst_81 {dimension_numbers = #tpu.dot_dimension_numbers<[1], [0], [0], [1], [0, 0, 1, 1], [], []>} : vector<8x72xf32>, vector<72x768xf32>, vector<8x768xf32> -> vector<8x768xf32>
    %79 = vector.broadcast %0 : vector<1x768xf32> to vector<8x768xf32>
    %80 = arith.mulf %78, %79 : vector<8x768xf32>
    %cst_82 = arith.constant dense<0.000000e+00> : vector<8xf32>
    %81 = vector.multi_reduction <add>, %80, %cst_82 [1] : vector<8x768xf32> to vector<8xf32>
    %82 = vector.shape_cast %81 : vector<8xf32> to vector<8x1xf32>
    %cst_83 = arith.constant 0.001953125 : f32
    %83 = vector.broadcast %cst_83 : f32 to vector<8x1xf32>
    %84 = arith.mulf %82, %83 : vector<8x1xf32>
    %85 = vector.broadcast %84 : vector<8x1xf32> to vector<8x768xf32>
    %86 = arith.subf %78, %85 : vector<8x768xf32>
    %87 = arith.mulf %86, %86 : vector<8x768xf32>
    %88 = vector.broadcast %0 : vector<1x768xf32> to vector<8x768xf32>
    %89 = arith.mulf %87, %88 : vector<8x768xf32>
    %cst_84 = arith.constant dense<0.000000e+00> : vector<8xf32>
    %90 = vector.multi_reduction <add>, %89, %cst_84 [1] : vector<8x768xf32> to vector<8xf32>
    %91 = vector.shape_cast %90 : vector<8xf32> to vector<8x1xf32>
    %cst_85 = arith.constant 0.001953125 : f32
    %92 = vector.broadcast %cst_85 : f32 to vector<8x1xf32>
    %93 = arith.mulf %91, %92 : vector<8x1xf32>
    %cst_86 = arith.constant 9.99999974E-6 : f32
    %94 = vector.broadcast %cst_86 : f32 to vector<8x1xf32>
    %95 = arith.addf %93, %94 : vector<8x1xf32>
    %96 = math.rsqrt %95 : vector<8x1xf32>
    %97 = arith.mulf %1, %96 : vector<8x1xf32>
    %98 = arith.mulf %84, %97 : vector<8x1xf32>
    %99 = arith.subf %2, %98 : vector<8x1xf32>
    %100 = vector.broadcast %97 : vector<8x1xf32> to vector<8x768xf32>
    %101 = arith.mulf %78, %100 : vector<8x768xf32>
    %102 = vector.broadcast %99 : vector<8x1xf32> to vector<8x768xf32>
    %103 = arith.addf %101, %102 : vector<8x768xf32>
    %c0_87 = arith.constant 0 : index
    %c128_88 = arith.constant 128 : index
    %104 = vector.load %arg0[%c0_87, %c128_88] : memref<8x1024xf32, #tpu.memory_space<vmem>>, vector<8x768xf32>
    %105 = arith.addf %103, %104 : vector<8x768xf32>
    %cst_89 = arith.constant 0.000000e+00 : f32
    %106 = vector.broadcast %cst_89 : f32 to vector<8x768xf32>
    %107 = arith.maximumf %105, %106 : vector<8x768xf32>
    %c0_90 = arith.constant 0 : index
    %c0_91 = arith.constant 0 : index
    %108 = vector.load %arg6[%c0_90, %c0_91] : memref<8x768xf32, #tpu.memory_space<vmem>>, vector<8x768xf32>
    tpu.vector_store %arg6[%c0_90, %c0_91], %107 {strides = array<i32>} : memref<8x768xf32, #tpu.memory_space<vmem>>, vector<8x768xf32>,
    return
  }
}

</mosaic_0001>

<llo_original>
// kernel: block_forward.1
$region0: #{block_forward.1}
  #allocation0 [shape = 'u32[]', space=smem, size = 0x4, offset = 0x4, fixed_abs, tag = 'smem constant byte address 0x4 - core index']
  #allocation1 [shape = 'u32[72,128]{1,0:T(1,128)}', space=vmem, size = 0x9000, scoped, tag = 'internal scratch']
  #allocation2 [shape = 'f32[72,768]{1,0:T(8,128)}', space=vmem, size = 0x36000, scoped, tag = 'scratch operand']
  #allocation3 [shape = 'f32[8,1024]{1,0:T(8,128)}', space=vmem, size = 0x8000, scoped, tag = 'scratch operand']
  %s0 = inlined_call_operand.vmem [shape: f32[8,1024], index: 0, kind: input, shape index: {}]
  %s1 = inlined_call_operand.vmem [shape: f32[1,768], index: 1, kind: input, shape index: {}]
  %s2 = inlined_call_operand.vmem [shape: f32[8,72], index: 2, kind: input, shape index: {}]
  %s3 = inlined_call_operand.vmem [shape: f32[8,72], index: 3, kind: input, shape index: {}]
  %s4 = inlined_call_operand.vmem [shape: f32[8,1], index: 4, kind: input, shape index: {}]
  %s5 = inlined_call_operand.vmem [shape: f32[8,1], index: 5, kind: input, shape index: {}]
  %s6 = inlined_call_operand.vmem [shape: f32[8,768], index: 6, kind: output, shape index: {}]
  %s7 = sld [smem:[#allocation0]]
  $region34: #{block_forward.1} parent=0
    _
  %s9 = ssub.s32 1, %s7
  %s10 = scalar_select 0, %s9, %s7
  // Predicated region
  $region2: #{block_forward.1} parent=0 // pred_check
    _
  $region3: #{block_forward.1} parent=0 // pred_check_branch
    %12 = sbr.rel (0) target = $region5
  $region4: #{block_forward.1} parent=0 // pred_region
    _
  $region5: #{block_forward.1} parent=0 // pred_fallthru
    _
  // Predicated region
  $region6: #{block_forward.1} parent=0 // pred_check
    _
  $region7: #{block_forward.1} parent=0 // pred_check_branch
    %14 = sbr.rel (0) target = $region9
  $region8: #{block_forward.1} parent=0 // pred_region
    _
  $region9: #{block_forward.1} parent=0 // pred_fallthru
    _
  // Predicated region
  $region10: #{block_forward.1} parent=0 // pred_check
    _
  $region11: #{block_forward.1} parent=0 // pred_check_branch
    %16 = sbr.rel (0) target = $region13
  $region12: #{block_forward.1} parent=0 // pred_region
    _
  $region13: #{block_forward.1} parent=0 // pred_fallthru
    _
  // Predicated region
  $region14: #{block_forward.1} parent=0 // pred_check
    _
  $region15: #{block_forward.1} parent=0 // pred_check_branch
    %18 = sbr.rel (0) target = $region17
  $region16: #{block_forward.1} parent=0 // pred_region
    _
  $region17: #{block_forward.1} parent=0 // pred_fallthru
    _
  // Predicated region
  $region18: #{block_forward.1} parent=0 // pred_check
    _
  $region19: #{block_forward.1} parent=0 // pred_check_branch
    %20 = sbr.rel (0) target = $region21
  $region20: #{block_forward.1} parent=0 // pred_region
    _
  $region21: #{block_forward.1} parent=0 // pred_fallthru
    _
  // Predicated region
  $region22: #{block_forward.1} parent=0 // pred_check
    _
  $region23: #{block_forward.1} parent=0 // pred_check_branch
    %22 = sbr.rel (0) target = $region25
  $region24: #{block_forward.1} parent=0 // pred_region
    _
  $region25: #{block_forward.1} parent=0 // pred_fallthru
    _
  %v23 = vld [vmem:[%s1] sm:$0x3f]
  %v24 = vld [vmem:[%s4] sm:$0xff]
  %v25 = vld [vmem:[%s5] sm:$0xff]
  %v26 = vld [vmem:[%s0] sm:$0xff]
  %v27 = vld [vmem:[%s0 + $0x8] sm:$0xff]
  %v28 = vld [vmem:[%s0 + $0x10] sm:$0xff]
  %v29 = vld [vmem:[%s0 + $0x18] sm:$0xff]
  %v30 = vld [vmem:[%s0 + $0x20] sm:$0xff]
  %v31 = vld [vmem:[%s0 + $0x28] sm:$0xff]
  %v32 = vld [vmem:[%s0 + $0x30] sm:$0xff]
  %40 = vrot.lane.b32.xlu0 %v26, 19
  %v41 = vpop.permute.xlu0 %40
  %42 = vrot.lane.b32.xlu0 %v27, 19
  %v43 = vpop.permute.xlu0 %42
  %44 = vrot.lane.b32.xlu0 %v28, 19
  %v45 = vpop.permute.xlu0 %44
  %46 = vrot.lane.b32.xlu0 %v29, 19
  %v47 = vpop.permute.xlu0 %46
  %48 = vrot.lane.b32.xlu0 %v30, 19
  %v49 = vpop.permute.xlu0 %48
  %50 = vrot.lane.b32.xlu0 %v31, 19
  %v51 = vpop.permute.xlu0 %50
  %52 = vrot.lane.b32.xlu0 %v32, 19
  %v53 = vpop.permute.xlu0 %52
  %vm54 = vcmask 154624
  %v55 = vsel %vm54, %v41, %v43
  %v56 = vsel %vm54, %v43, %v45
  %v57 = vsel %vm54, %v45, %v47
  %v58 = vsel %vm54, %v47, %v49
  %v59 = vsel %vm54, %v49, %v51
  %v60 = vsel %vm54, %v51, %v53
  %67 = vst [vmem:[#allocation2] sm:$0xff] %v55
  %68 = vst [vmem:[#allocation2 + $0x8] sm:$0xff] %v56
  %69 = vst [vmem:[#allocation2 + $0x10] sm:$0xff] %v57
  %70 = vst [vmem:[#allocation2 + $0x18] sm:$0xff] %v58
  %71 = vst [vmem:[#allocation2 + $0x20] sm:$0xff] %v59
  %72 = vst [vmem:[#allocation2 + $0x28] sm:$0xff] %v60
  %v73 = vld [vmem:[%s0] sm:$0xff]
  %v74 = vld [vmem:[%s0 + $0x8] sm:$0xff]
  %v75 = vld [vmem:[%s0 + $0x10] sm:$0xff]
  %v76 = vld [vmem:[%s0 + $0x18] sm:$0xff]
  %v77 = vld [vmem:[%s0 + $0x20] sm:$0xff]
  %v78 = vld [vmem:[%s0 + $0x28] sm:$0xff]
  %v79 = vld [vmem:[%s0 + $0x30] sm:$0xff]
  %87 = vrot.lane.b32.xlu0 %v73, 18
  %v88 = vpop.permute.xlu0 %87
  %89 = vrot.lane.b32.xlu0 %v74, 18
  %v90 = vpop.permute.xlu0 %89
  %91 = vrot.lane.b32.xlu0 %v75, 18
  %v92 = vpop.permute.xlu0 %91
  %93 = vrot.lane.b32.xlu0 %v76, 18
  %v94 = vpop.permute.xlu0 %93
  %95 = vrot.lane.b32.xlu0 %v77, 18
  %v96 = vpop.permute.xlu0 %95
  %97 = vrot.lane.b32.xlu0 %v78, 18
  %v98 = vpop.permute.xlu0 %97
  %99 = vrot.lane.b32.xlu0 %v79, 18
  %v100 = vpop.permute.xlu0 %99
  %vm101 = vcmask 146432
  %v102 = vsel %vm101, %v88, %v90
  %v103 = vsel %vm101, %v90, %v92
  %v104 = vsel %vm101, %v92, %v94
  %v105 = vsel %vm101, %v94, %v96
  %v106 = vsel %vm101, %v96, %v98
  %v107 = vsel %vm101, %v98, %v100
  %114 = vst [vmem:[#allocation2 + $0x30] sm:$0xff] %v102
  %115 = vst [vmem:[#allocation2 + $0x38] sm:$0xff] %v103
  %116 = vst [vmem:[#allocation2 + $0x40] sm:$0xff] %v104
  %117 = vst [vmem:[#allocation2 + $0x48] sm:$0xff] %v105
  %118 = vst [vmem:[#allocation2 + $0x50] sm:$0xff] %v106
  %119 = vst [vmem:[#allocation2 + $0x58] sm:$0xff] %v107
  %v120 = vld [vmem:[%s0] sm:$0xff]
  %v121 = vld [vmem:[%s0 + $0x8] sm:$0xff]
  %v122 = vld [vmem:[%s0 + $0x10] sm:$0xff]
  %v123 = vld [vmem:[%s0 + $0x18] sm:$0xff]
  %v124 = vld [vmem:[%s0 + $0x20] sm:$0xff]
  %v125 = vld [vmem:[%s0 + $0x28] sm:$0xff]
  %v126 = vld [vmem:[%s0 + $0x30] sm:$0xff]
  %134 = vrot.lane.b32.xlu0 %v120, 17
  %v135 = vpop.permute.xlu0 %134
  %136 = vrot.lane.b32.xlu0 %v121, 17
  %v137 = vpop.permute.xlu0 %136
  %138 = vrot.lane.b32.xlu0 %v122, 17
  %v139 = vpop.permute.xlu0 %138
  %140 = vrot.lane.b32.xlu0 %v123, 17
  %v141 = vpop.permute.xlu0 %140
  %142 = vrot.lane.b32.xlu0 %v124, 17
  %v143 = vpop.permute.xlu0 %142
  %144 = vrot.lane.b32.xlu0 %v125, 17
  %v145 = vpop.permute.xlu0 %144
  %146 = vrot.lane.b32.xlu0 %v126, 17
  %v147 = vpop.permute.xlu0 %146
  %vm148 = vcmask 138240
  %v149 = vsel %vm148, %v135, %v137
  %v150 = vsel %vm148, %v137, %v139
  %v151 = vsel %vm148, %v139, %v141
  %v152 = vsel %vm148, %v141, %v143
  %v153 = vsel %vm148, %v143, %v145
  %v154 = vsel %vm148, %v145, %v147
  %161 = vst [vmem:[#allocation2 + $0x60] sm:$0xff] %v149
  %162 = vst [vmem:[#allocation2 + $0x68] sm:$0xff] %v150
  %163 = vst [vmem:[#allocation2 + $0x70] sm:$0xff] %v151
  %164 = vst [vmem:[#allocation2 + $0x78] sm:$0xff] %v152
  %165 = vst [vmem:[#allocation2 + $0x80] sm:$0xff] %v153
  %166 = vst [vmem:[#allocation2 + $0x88] sm:$0xff] %v154
  %v167 = vld [vmem:[%s0] sm:$0xff]
  %v168 = vld [vmem:[%s0 + $0x8] sm:$0xff]
  %v169 = vld [vmem:[%s0 + $0x10] sm:$0xff]
  %v170 = vld [vmem:[%s0 + $0x18] sm:$0xff]
  %v171 = vld [vmem:[%s0 + $0x20] sm:$0xff]
  %v172 = vld [vmem:[%s0 + $0x28] sm:$0xff]
  %v173 = vld [vmem:[%s0 + $0x30] sm:$0xff]
  %181 = vrot.lane.b32.xlu0 %v167, 1
  %v182 = vpop.permute.xlu0 %181
  %183 = vrot.lane.b32.xlu0 %v168, 1
  %v184 = vpop.permute.xlu0 %183
  %185 = vrot.lane.b32.xlu0 %v169, 1
  %v186 = vpop.permute.xlu0 %185
  %187 = vrot.lane.b32.xlu0 %v170, 1
  %v188 = vpop.permute.xlu0 %187
  %189 = vrot.lane.b32.xlu0 %v171, 1
  %v190 = vpop.permute.xlu0 %189
  %191 = vrot.lane.b32.xlu0 %v172, 1
  %v192 = vpop.permute.xlu0 %191
  %193 = vrot.lane.b32.xlu0 %v173, 1
  %v194 = vpop.permute.xlu0 %193
  %vm195 = vcmask 7168
  %v196 = vsel %vm195, %v182, %v184
  %v197 = vsel %vm195, %v184, %v186
  %v198 = vsel %vm195, %v186, %v188
  %v199 = vsel %vm195, %v188, %v190
  %v200 = vsel %vm195, %v190, %v192
  %v201 = vsel %vm195, %v192, %v194
  %208 = vst [vmem:[#allocation2 + $0x90] sm:$0xff] %v196
  %209 = vst [vmem:[#allocation2 + $0x98] sm:$0xff] %v197
  %210 = vst [vmem:[#allocation2 + $0xa0] sm:$0xff] %v198
  %211 = vst [vmem:[#allocation2 + $0xa8] sm:$0xff] %v199
  %212 = vst [vmem:[#allocation2 + $0xb0] sm:$0xff] %v200
  %213 = vst [vmem:[#allocation2 + $0xb8] sm:$0xff] %v201
  %v214 = vld [vmem:[%s0 + $0x8] sm:$0xff]
  %v215 = vld [vmem:[%s0 + $0x10] sm:$0xff]
  %v216 = vld [vmem:[%s0 + $0x18] sm:$0xff]
  %v217 = vld [vmem:[%s0 + $0x20] sm:$0xff]
  %v218 = vld [vmem:[%s0 + $0x28] sm:$0xff]
  %v219 = vld [vmem:[%s0 + $0x30] sm:$0xff]
  %220 = vst [vmem:[#allocation2 + $0xc0] sm:$0xff] %v214
  %221 = vst [vmem:[#allocation2 + $0xc8] sm:$0xff] %v215
  %222 = vst [vmem:[#allocation2 + $0xd0] sm:$0xff] %v216
  %223 = vst [vmem:[#allocation2 + $0xd8] sm:$0xff] %v217
  %224 = vst [vmem:[#allocation2 + $0xe0] sm:$0xff] %v218
  %225 = vst [vmem:[#allocation2 + $0xe8] sm:$0xff] %v219
  %v226 = vld [vmem:[%s0 + $0x8] sm:$0xff]
  %v227 = vld [vmem:[%s0 + $0x10] sm:$0xff]
  %v228 = vld [vmem:[%s0 + $0x18] sm:$0xff]
  %v229 = vld [vmem:[%s0 + $0x20] sm:$0xff]
  %v230 = vld [vmem:[%s0 + $0x28] sm:$0xff]
  %v231 = vld [vmem:[%s0 + $0x30] sm:$0xff]
  %v232 = vld [vmem:[%s0 + $0x38] sm:$0xff]
  %240 = vrot.lane.b32.xlu0 %v226, 127
  %v241 = vpop.permute.xlu0 %240
  %242 = vrot.lane.b32.xlu0 %v227, 127
  %v243 = vpop.permute.xlu0 %242
  %244 = vrot.lane.b32.xlu0 %v228, 127
  %v245 = vpop.permute.xlu0 %244
  %246 = vrot.lane.b32.xlu0 %v229, 127
  %v247 = vpop.permute.xlu0 %246
  %248 = vrot.lane.b32.xlu0 %v230, 127
  %v249 = vpop.permute.xlu0 %248
  %250 = vrot.lane.b32.xlu0 %v231, 127
  %v251 = vpop.permute.xlu0 %250
  %252 = vrot.lane.b32.xlu0 %v232, 127
  %v253 = vpop.permute.xlu0 %252
  %vm254 = vcmask 1039360
  %v255 = vsel %vm254, %v241, %v243
  %v256 = vsel %vm254, %v243, %v245
  %v257 = vsel %vm254, %v245, %v247
  %v258 = vsel %vm254, %v247, %v249
  %v259 = vsel %vm254, %v249, %v251
  %v260 = vsel %vm254, %v251, %v253
  %267 = vst [vmem:[#allocation2 + $0xf0] sm:$0xff] %v255
  %268 = vst [vmem:[#allocation2 + $0xf8] sm:$0xff] %v256
  %269 = vst [vmem:[#allocation2 + $0x100] sm:$0xff] %v257
  %270 = vst [vmem:[#allocation2 + $0x108] sm:$0xff] %v258
  %271 = vst [vmem:[#allocation2 + $0x110] sm:$0xff] %v259
  %272 = vst [vmem:[#allocation2 + $0x118] sm:$0xff] %v260
  %v273 = vld [vmem:[%s0 + $0x8] sm:$0xff]
  %v274 = vld [vmem:[%s0 + $0x10] sm:$0xff]
  %v275 = vld [vmem:[%s0 + $0x18] sm:$0xff]
  %v276 = vld [vmem:[%s0 + $0x20] sm:$0xff]
  %v277 = vld [vmem:[%s0 + $0x28] sm:$0xff]
  %v278 = vld [vmem:[%s0 + $0x30] sm:$0xff]
  %v279 = vld [vmem:[%s0 + $0x38] sm:$0xff]
  %287 = vrot.lane.b32.xlu0 %v273, 111
  %v288 = vpop.permute.xlu0 %287
  %289 = vrot.lane.b32.xlu0 %v274, 111
  %v290 = vpop.permute.xlu0 %289
  %291 = vrot.lane.b32.xlu0 %v275, 111
  %v292 = vpop.permute.xlu0 %291
  %293 = vrot.lane.b32.xlu0 %v276, 111
  %v294 = vpop.permute.xlu0 %293
  %295 = vrot.lane.b32.xlu0 %v277, 111
  %v296 = vpop.permute.xlu0 %295
  %297 = vrot.lane.b32.xlu0 %v278, 111
  %v298 = vpop.permute.xlu0 %297
  %299 = vrot.lane.b32.xlu0 %v279, 111
  %v300 = vpop.permute.xlu0 %299
  %vm301 = vcmask 908288
  %v302 = vsel %vm301, %v288, %v290
  %v303 = vsel %vm301, %v290, %v292
  %v304 = vsel %vm301, %v292, %v294
  %v305 = vsel %vm301, %v294, %v296
  %v306 = vsel %vm301, %v296, %v298
  %v307 = vsel %vm301, %v298, %v300
  %314 = vst [vmem:[#allocation2 + $0x120] sm:$0xff] %v302
  %315 = vst [vmem:[#allocation2 + $0x128] sm:$0xff] %v303
  %316 = vst [vmem:[#allocation2 + $0x130] sm:$0xff] %v304
  %317 = vst [vmem:[#allocation2 + $0x138] sm:$0xff] %v305
  %318 = vst [vmem:[#allocation2 + $0x140] sm:$0xff] %v306
  %319 = vst [vmem:[#allocation2 + $0x148] sm:$0xff] %v307
  %v320 = vld [vmem:[%s0 + $0x8] sm:$0xff]
  %v321 = vld [vmem:[%s0 + $0x10] sm:$0xff]
  %v322 = vld [vmem:[%s0 + $0x18] sm:$0xff]
  %v323 = vld [vmem:[%s0 + $0x20] sm:$0xff]
  %v324 = vld [vmem:[%s0 + $0x28] sm:$0xff]
  %v325 = vld [vmem:[%s0 + $0x30] sm:$0xff]
  %v326 = vld [vmem:[%s0 + $0x38] sm:$0xff]
  %334 = vrot.lane.b32.xlu0 %v320, 110
  %v335 = vpop.permute.xlu0 %334
  %336 = vrot.lane.b32.xlu0 %v321, 110
  %v337 = vpop.permute.xlu0 %336
  %338 = vrot.lane.b32.xlu0 %v322, 110
  %v339 = vpop.permute.xlu0 %338
  %340 = vrot.lane.b32.xlu0 %v323, 110
  %v341 = vpop.permute.xlu0 %340
  %342 = vrot.lane.b32.xlu0 %v324, 110
  %v343 = vpop.permute.xlu0 %342
  %344 = vrot.lane.b32.xlu0 %v325, 110
  %v345 = vpop.permute.xlu0 %344
  %346 = vrot.lane.b32.xlu0 %v326, 110
  %v347 = vpop.permute.xlu0 %346
  %vm348 = vcmask 900096
  %v349 = vsel %vm348, %v335, %v337
  %v350 = vsel %vm348, %v337, %v339
  %v351 = vsel %vm348, %v339, %v341
  %v352 = vsel %vm348, %v341, %v343
  %v353 = vsel %vm348, %v343, %v345
  %v354 = vsel %vm348, %v345, %v347
  %361 = vst [vmem:[#allocation2 + $0x150] sm:$0xff] %v349
  %362 = vst [vmem:[#allocation2 + $0x158] sm:$0xff] %v350
  %363 = vst [vmem:[#allocation2 + $0x160] sm:$0xff] %v351
  %364 = vst [vmem:[#allocation2 + $0x168] sm:$0xff] %v352
  %365 = vst [vmem:[#allocation2 + $0x170] sm:$0xff] %v353
  %366 = vst [vmem:[#allocation2 + $0x178] sm:$0xff] %v354
  %v367 = vld [vmem:[%s0 + $0x8] sm:$0xff]
  %v368 = vld [vmem:[%s0 + $0x10] sm:$0xff]
  %v369 = vld [vmem:[%s0 + $0x18] sm:$0xff]
  %v370 = vld [vmem:[%s0 + $0x20] sm:$0xff]
  %v371 = vld [vmem:[%s0 + $0x28] sm:$0xff]
  %v372 = vld [vmem:[%s0 + $0x30] sm:$0xff]
  %v373 = vld [vmem:[%s0 + $0x38] sm:$0xff]
  %381 = vrot.lane.b32.xlu0 %v367, 109
  %v382 = vpop.permute.xlu0 %381
  %383 = vrot.lane.b32.xlu0 %v368, 109
  %v384 = vpop.permute.xlu0 %383
  %385 = vrot.lane.b32.xlu0 %v369, 109
  %v386 = vpop.permute.xlu0 %385
  %387 = vrot.lane.b32.xlu0 %v370, 109
  %v388 = vpop.permute.xlu0 %387
  %389 = vrot.lane.b32.xlu0 %v371, 109
  %v390 = vpop.permute.xlu0 %389
  %391 = vrot.lane.b32.xlu0 %v372, 109
  %v392 = vpop.permute.xlu0 %391
  %393 = vrot.lane.b32.xlu0 %v373, 109
  %v394 = vpop.permute.xlu0 %393
  %vm395 = vcmask 891904
  %v396 = vsel %vm395, %v382, %v384
  %v397 = vsel %vm395, %v384, %v386
  %v398 = vsel %vm395, %v386, %v388
  %v399 = vsel %vm395, %v388, %v390
  %v400 = vsel %vm395, %v390, %v392
  %v401 = vsel %vm395, %v392, %v394
  %408 = vst [vmem:[#allocation2 + $0x180] sm:$0xff] %v396
  %409 = vst [vmem:[#allocation2 + $0x188] sm:$0xff] %v397
  %410 = vst [vmem:[#allocation2 + $0x190] sm:$0xff] %v398
  %411 = vst [vmem:[#allocation2 + $0x198] sm:$0xff] %v399
  %412 = vst [vmem:[#allocation2 + $0x1a0] sm:$0xff] %v400
  %413 = vst [vmem:[#allocation2 + $0x1a8] sm:$0xff] %v401
  %v414 = vld [vmem:[%s2] sm:$0xff]
  %v415 = vld [vmem:[#allocation2] sm:$0xff]
  %v416 = vld [vmem:[#allocation2 + $0x8] sm:$0xff]
  %v417 = vld [vmem:[#allocation2 + $0x10] sm:$0xff]
  %v418 = vld [vmem:[#allocation2 + $0x18] sm:$0xff]
  %v419 = vld [vmem:[#allocation2 + $0x20] sm:$0xff]
  %v420 = vld [vmem:[#allocation2 + $0x28] sm:$0xff]
  %v421 = vld [vmem:[#allocation2 + $0x30] sm:$0xff]
  %v422 = vld [vmem:[#allocation2 + $0x38] sm:$0xff]
  %v423 = vld [vmem:[#allocation2 + $0x40] sm:$0xff]
  %v424 = vld [vmem:[#allocation2 + $0x48] sm:$0xff]
  %v425 = vld [vmem:[#allocation2 + $0x50] sm:$0xff]
  %v426 = vld [vmem:[#allocation2 + $0x58] sm:$0xff]
  %v427 = vld [vmem:[#allocation2 + $0x60] sm:$0xff]
  %v428 = vld [vmem:[#allocation2 + $0x68] sm:$0xff]
  %v429 = vld [vmem:[#allocation2 + $0x70] sm:$0xff]
  %v430 = vld [vmem:[#allocation2 + $0x78] sm:$0xff]
  %v431 = vld [vmem:[#allocation2 + $0x80] sm:$0xff]
  %v432 = vld [vmem:[#allocation2 + $0x88] sm:$0xff]
  %v433 = vld [vmem:[#allocation2 + $0x90] sm:$0xff]
  %v434 = vld [vmem:[#allocation2 + $0x98] sm:$0xff]
  %v435 = vld [vmem:[#allocation2 + $0xa0] sm:$0xff]
  %v436 = vld [vmem:[#allocation2 + $0xa8] sm:$0xff]
  %v437 = vld [vmem:[#allocation2 + $0xb0] sm:$0xff]
  %v438 = vld [vmem:[#allocation2 + $0xb8] sm:$0xff]
  %v439 = vld [vmem:[#allocation2 + $0xc0] sm:$0xff]
  %v440 = vld [vmem:[#allocation2 + $0xc8] sm:$0xff]
  %v441 = vld [vmem:[#allocation2 + $0xd0] sm:$0xff]
  %v442 = vld [vmem:[#allocation2 + $0xd8] sm:$0xff]
  %v443 = vld [vmem:[#allocation2 + $0xe0] sm:$0xff]
  %v444 = vld [vmem:[#allocation2 + $0xe8] sm:$0xff]
  %v445 = vld [vmem:[#allocation2 + $0xf0] sm:$0xff]
  %v446 = vld [vmem:[#allocation2 + $0xf8] sm:$0xff]
  %v447 = vld [vmem:[#allocation2 + $0x100] sm:$0xff]
  %v448 = vld [vmem:[#allocation2 + $0x108] sm:$0xff]
  %v449 = vld [vmem:[#allocation2 + $0x110] sm:$0xff]
  %v450 = vld [vmem:[#allocation2 + $0x118] sm:$0xff]
  %v451 = vld [vmem:[#allocation2 + $0x120] sm:$0xff]
  %v452 = vld [vmem:[#allocation2 + $0x128] sm:$0xff]
  %v453 = vld [vmem:[#allocation2 + $0x130] sm:$0xff]
  %v454 = vld [vmem:[#allocation2 + $0x138] sm:$0xff]
  %v455 = vld [vmem:[#allocation2 + $0x140] sm:$0xff]
  %v456 = vld [vmem:[#allocation2 + $0x148] sm:$0xff]
  %v457 = vld [vmem:[#allocation2 + $0x150] sm:$0xff]
  %v458 = vld [vmem:[#allocation2 + $0x158] sm:$0xff]
  %v459 = vld [vmem:[#allocation2 + $0x160] sm:$0xff]
  %v460 = vld [vmem:[#allocation2 + $0x168] sm:$0xff]
  %v461 = vld [vmem:[#allocation2 + $0x170] sm:$0xff]
  %v462 = vld [vmem:[#allocation2 + $0x178] sm:$0xff]
  %v463 = vld [vmem:[#allocation2 + $0x180] sm:$0xff]
  %v464 = vld [vmem:[#allocation2 + $0x188] sm:$0xff]
  %v465 = vld [vmem:[#allocation2 + $0x190] sm:$0xff]
  %v466 = vld [vmem:[#allocation2 + $0x198] sm:$0xff]
  %v467 = vld [vmem:[#allocation2 + $0x1a0] sm:$0xff]
  %v468 = vld [vmem:[#allocation2 + $0x1a8] sm:$0xff]
  %vm469 = vcmask 588800
  %v471 = vsel %vm469, %v414, 0
  %473 = vmatpush.msra.mxu0 0.0
  %474 = vmatpush.msra.mxu0 0.0
  %475 = vmatpush.msra.mxu0 0.0
  %476 = vmatpush.msra.mxu0 0.0
  %477 = vmatpush.msra.mxu0 0.0
  %478 = vmatpush.msra.mxu0 0.0
  %479 = vmatpush.msra.mxu0 0.0
  %480 = vmatpush.msra.mxu0 %v463
  %481 = vmatpush.msra.mxu0 %v457
  %482 = vmatpush.msra.mxu0 %v451
  %483 = vmatpush.msra.mxu0 %v445
  %484 = vmatpush.msra.mxu0 %v439
  %485 = vmatpush.msra.mxu0 %v433
  %486 = vmatpush.msra.mxu0 %v427
  %487 = vmatpush.msra.mxu0 %v421
  %488 = vmatpush.msra.mxu0 %v415
  %489 = vmatmul.f32.gmra.mxu0 %v471
  %v490 = vpop.f32.mrf.mxu0
  %v491 = vadd.f32 0.0, %v490
  %492 = vdwg.mxu0
  %493 = vmatpush.msra.mxu0 0.0
  %494 = vmatpush.msra.mxu0 0.0
  %495 = vmatpush.msra.mxu0 0.0
  %496 = vmatpush.msra.mxu0 0.0
  %497 = vmatpush.msra.mxu0 0.0
  %498 = vmatpush.msra.mxu0 0.0
  %499 = vmatpush.msra.mxu0 0.0
  %500 = vmatpush.msra.mxu0 %v464
  %501 = vmatpush.msra.mxu0 %v458
  %502 = vmatpush.msra.mxu0 %v452
  %503 = vmatpush.msra.mxu0 %v446
  %504 = vmatpush.msra.mxu0 %v440
  %505 = vmatpush.msra.mxu0 %v434
  %506 = vmatpush.msra.mxu0 %v428
  %507 = vmatpush.msra.mxu0 %v422
  %508 = vmatpush.msra.mxu0 %v416
  %509 = vmatmul.f32.gmra.mxu0 %v471
  %v510 = vpop.f32.mrf.mxu0
  %v511 = vadd.f32 0.0, %v510
  %512 = vdwg.mxu0
  %513 = vmatpush.msra.mxu0 0.0
  %514 = vmatpush.msra.mxu0 0.0
  %515 = vmatpush.msra.mxu0 0.0
  %516 = vmatpush.msra.mxu0 0.0
  %517 = vmatpush.msra.mxu0 0.0
  %518 = vmatpush.msra.mxu0 0.0
  %519 = vmatpush.msra.mxu0 0.0
  %520 = vmatpush.msra.mxu0 %v465
  %521 = vmatpush.msra.mxu0 %v459
  %522 = vmatpush.msra.mxu0 %v453
  %523 = vmatpush.msra.mxu0 %v447
  %524 = vmatpush.msra.mxu0 %v441
  %525 = vmatpush.msra.mxu0 %v435
  %526 = vmatpush.msra.mxu0 %v429
  %527 = vmatpush.msra.mxu0 %v423
  %528 = vmatpush.msra.mxu0 %v417
  %529 = vmatmul.f32.gmra.mxu0 %v471
  %v530 = vpop.f32.mrf.mxu0
  %v531 = vadd.f32 0.0, %v530
  %532 = vdwg.mxu0
  %533 = vmatpush.msra.mxu0 0.0
  %534 = vmatpush.msra.mxu0 0.0
  %535 = vmatpush.msra.mxu0 0.0
  %536 = vmatpush.msra.mxu0 0.0
  %537 = vmatpush.msra.mxu0 0.0
  %538 = vmatpush.msra.mxu0 0.0
  %539 = vmatpush.msra.mxu0 0.0
  %540 = vmatpush.msra.mxu0 %v466
  %541 = vmatpush.msra.mxu0 %v460
  %542 = vmatpush.msra.mxu0 %v454
  %543 = vmatpush.msra.mxu0 %v448
  %544 = vmatpush.msra.mxu0 %v442
  %545 = vmatpush.msra.mxu0 %v436
  %546 = vmatpush.msra.mxu0 %v430
  %547 = vmatpush.msra.mxu0 %v424
  %548 = vmatpush.msra.mxu0 %v418
  %549 = vmatmul.f32.gmra.mxu0 %v471
  %v550 = vpop.f32.mrf.mxu0
  %v551 = vadd.f32 0.0, %v550
  %552 = vdwg.mxu0
  %553 = vmatpush.msra.mxu0 0.0
  %554 = vmatpush.msra.mxu0 0.0
  %555 = vmatpush.msra.mxu0 0.0
  %556 = vmatpush.msra.mxu0 0.0
  %557 = vmatpush.msra.mxu0 0.0
  %558 = vmatpush.msra.mxu0 0.0
  %559 = vmatpush.msra.mxu0 0.0
  %560 = vmatpush.msra.mxu0 %v467
  %561 = vmatpush.msra.mxu0 %v461
  %562 = vmatpush.msra.mxu0 %v455
  %563 = vmatpush.msra.mxu0 %v449
  %564 = vmatpush.msra.mxu0 %v443
  %565 = vmatpush.msra.mxu0 %v437
  %566 = vmatpush.msra.mxu0 %v431
  %567 = vmatpush.msra.mxu0 %v425
  %568 = vmatpush.msra.mxu0 %v419
  %569 = vmatmul.f32.gmra.mxu0 %v471
  %v570 = vpop.f32.mrf.mxu0
  %v571 = vadd.f32 0.0, %v570
  %572 = vdwg.mxu0
  %573 = vmatpush.msra.mxu0 0.0
  %574 = vmatpush.msra.mxu0 0.0
  %575 = vmatpush.msra.mxu0 0.0
  %576 = vmatpush.msra.mxu0 0.0
  %577 = vmatpush.msra.mxu0 0.0
  %578 = vmatpush.msra.mxu0 0.0
  %579 = vmatpush.msra.mxu0 0.0
  %580 = vmatpush.msra.mxu0 %v468
  %581 = vmatpush.msra.mxu0 %v462
  %582 = vmatpush.msra.mxu0 %v456
  %583 = vmatpush.msra.mxu0 %v450
  %584 = vmatpush.msra.mxu0 %v444
  %585 = vmatpush.msra.mxu0 %v438
  %586 = vmatpush.msra.mxu0 %v432
  %587 = vmatpush.msra.mxu0 %v426
  %588 = vmatpush.msra.mxu0 %v420
  %589 = vmatmul.f32.gmra.mxu0 %v471
  %v590 = vpop.f32.mrf.mxu0
  %v591 = vadd.f32 0.0, %v590
  %592 = vdwg.mxu0
  %v594 = vperm.slane %v23, 0
  %v595 = vperm.slane %v23, 1
  %v596 = vperm.slane %v23, 2
  %v597 = vperm.slane %v23, 3
  %v598 = vperm.slane %v23, 4
  %v599 = vperm.slane %v23, 5
  %v606 = vmul.f32 %v491, %v594
  %v607 = vmul.f32 %v511, %v595
  %v608 = vmul.f32 %v531, %v596
  %v609 = vmul.f32 %v551, %v597
  %v610 = vmul.f32 %v571, %v598
  %v611 = vmul.f32 %v591, %v599
  %v612 = vadd.f32 %v606, %v607
  %v613 = vadd.f32 %v612, %v608
  %v614 = vadd.f32 %v613, %v609
  %v615 = vadd.f32 %v614, %v610
  %v616 = vadd.f32 %v615, %v611
  %617 = vadd.xlane.f32.xlu0 %v616
  %v618 = vpop.xlane.xlu0 %617
  %v619 = vmul.f32 %v618, 0.001953125
  %v620 = vsub.f32 %v491, %v619
  %v621 = vsub.f32 %v511, %v619
  %v622 = vsub.f32 %v531, %v619
  %v623 = vsub.f32 %v551, %v619
  %v624 = vsub.f32 %v571, %v619
  %v625 = vsub.f32 %v591, %v619
  %v626 = vmul.f32 %v620, %v620
  %v627 = vmul.f32 %v621, %v621
  %v628 = vmul.f32 %v622, %v622
  %v629 = vmul.f32 %v623, %v623
  %v630 = vmul.f32 %v624, %v624
  %v631 = vmul.f32 %v625, %v625
  %v632 = vmul.f32 %v626, %v594
  %v633 = vmul.f32 %v627, %v595
  %v634 = vmul.f32 %v628, %v596
  %v635 = vmul.f32 %v629, %v597
  %v636 = vmul.f32 %v630, %v598
  %v637 = vmul.f32 %v631, %v599
  %v638 = vadd.f32 %v632, %v633
  %v639 = vadd.f32 %v638, %v634
  %v640 = vadd.f32 %v639, %v635
  %v641 = vadd.f32 %v640, %v636
  %v642 = vadd.f32 %v641, %v637
  %643 = vadd.xlane.f32.xlu0 %v642
  %v644 = vpop.xlane.xlu0 %643
  %v645 = vmul.f32 %v644, 0.001953125
  %v646 = vadd.f32 %v645, 1e-05
  %v647 = vrsqrt.pop %v646
  %v648 = vmul.f32 %v647, %v646
  %v649 = vmul.f32 %v648, %v647
  %v650 = vmul.f32 0.5, %v649
  %v651 = vsub.f32 1.5, %v650
  %v652 = vmul.f32 %v647, %v651
  %vm653 = vweird.f32 %v646
  %vm654 = vweird.f32 %v647
  %vm655 = vmor %vm653, %vm654
  %v656 = vsel %vm655, %v647, %v652
  %v657 = vmul.f32 %v24, %v656
  %v658 = vmul.f32 %v619, %v657
  %v659 = vsub.f32 %v25, %v658
  %661 = vset.pattern.permute.xlu0 0
  %662 = vperm.xlu0 %661, %v657
  %v663 = vpop.permute.xlu0 %662
  %v665 = vmul.f32 %v491, %v663
  %v666 = vmul.f32 %v511, %v663
  %v667 = vmul.f32 %v531, %v663
  %v668 = vmul.f32 %v551, %v663
  %v669 = vmul.f32 %v571, %v663
  %v670 = vmul.f32 %v591, %v663
  %672 = vset.pattern.permute.xlu0 0
  %673 = vperm.xlu0 %672, %v659
  %v674 = vpop.permute.xlu0 %673
  %v676 = vadd.f32 %v665, %v674
  %v677 = vadd.f32 %v666, %v674
  %v678 = vadd.f32 %v667, %v674
  %v679 = vadd.f32 %v668, %v674
  %v680 = vadd.f32 %v669, %v674
  %v681 = vadd.f32 %v670, %v674
  %v682 = vmax.f32 %v676, 0.0
  %v683 = vmax.f32 %v677, 0.0
  %v684 = vmax.f32 %v678, 0.0
  %v685 = vmax.f32 %v679, 0.0
  %v686 = vmax.f32 %v680, 0.0
  %v687 = vmax.f32 %v681, 0.0
  %v688 = vmul.f32 %v682, %v594
  %v689 = vmul.f32 %v683, %v595
  %v690 = vmul.f32 %v684, %v596
  %v691 = vmul.f32 %v685, %v597
  %v692 = vmul.f32 %v686, %v598
  %v693 = vmul.f32 %v687, %v599
  %694 = vst [vmem:[#allocation3] sm:$0xff] 0.0
  %695 = vst [vmem:[#allocation3 + $0x38] sm:$0xff] 0.0
  %696 = vst [vmem:[#allocation3 + $0x8] sm:$0xff] %v688
  %697 = vst [vmem:[#allocation3 + $0x10] sm:$0xff] %v689
  %698 = vst [vmem:[#allocation3 + $0x18] sm:$0xff] %v690
  %699 = vst [vmem:[#allocation3 + $0x20] sm:$0xff] %v691
  %700 = vst [vmem:[#allocation3 + $0x28] sm:$0xff] %v692
  %701 = vst [vmem:[#allocation3 + $0x30] sm:$0xff] %v693
  %v702 = vld [vmem:[#allocation3] sm:$0xff]
  %v703 = vld [vmem:[#allocation3 + $0x8] sm:$0xff]
  %v704 = vld [vmem:[#allocation3 + $0x10] sm:$0xff]
  %v705 = vld [vmem:[#allocation3 + $0x18] sm:$0xff]
  %v706 = vld [vmem:[#allocation3 + $0x20] sm:$0xff]
  %v707 = vld [vmem:[#allocation3 + $0x28] sm:$0xff]
  %v708 = vld [vmem:[#allocation3 + $0x30] sm:$0xff]
  %716 = vrot.lane.b32.xlu0 %v702, 19
  %v717 = vpop.permute.xlu0 %716
  %718 = vrot.lane.b32.xlu0 %v703, 19
  %v719 = vpop.permute.xlu0 %718
  %720 = vrot.lane.b32.xlu0 %v704, 19
  %v721 = vpop.permute.xlu0 %720
  %722 = vrot.lane.b32.xlu0 %v705, 19
  %v723 = vpop.permute.xlu0 %722
  %724 = vrot.lane.b32.xlu0 %v706, 19
  %v725 = vpop.permute.xlu0 %724
  %726 = vrot.lane.b32.xlu0 %v707, 19
  %v727 = vpop.permute.xlu0 %726
  %728 = vrot.lane.b32.xlu0 %v708, 19
  %v729 = vpop.permute.xlu0 %728
  %v730 = vsel %vm54, %v717, %v719
  %v731 = vsel %vm54, %v719, %v721
  %v732 = vsel %vm54, %v721, %v723
  %v733 = vsel %vm54, %v723, %v725
  %v734 = vsel %vm54, %v725, %v727
  %v735 = vsel %vm54, %v727, %v729
  %742 = vst [vmem:[#allocation2] sm:$0xff] %v730
  %743 = vst [vmem:[#allocation2 + $0x8] sm:$0xff] %v731
  %744 = vst [vmem:[#allocation2 + $0x10] sm:$0xff] %v732
  %745 = vst [vmem:[#allocation2 + $0x18] sm:$0xff] %v733
  %746 = vst [vmem:[#allocation2 + $0x20] sm:$0xff] %v734
  %747 = vst [vmem:[#allocation2 + $0x28] sm:$0xff] %v735
  %v748 = vld [vmem:[#allocation3] sm:$0xff]
  %v749 = vld [vmem:[#allocation3 + $0x8] sm:$0xff]
  %v750 = vld [vmem:[#allocation3 + $0x10] sm:$0xff]
  %v751 = vld [vmem:[#allocation3 + $0x18] sm:$0xff]
  %v752 = vld [vmem:[#allocation3 + $0x20] sm:$0xff]
  %v753 = vld [vmem:[#allocation3 + $0x28] sm:$0xff]
  %v754 = vld [vmem:[#allocation3 + $0x30] sm:$0xff]
  %762 = vrot.lane.b32.xlu0 %v748, 18
  %v763 = vpop.permute.xlu0 %762
  %764 = vrot.lane.b32.xlu0 %v749, 18
  %v765 = vpop.permute.xlu0 %764
  %766 = vrot.lane.b32.xlu0 %v750, 18
  %v767 = vpop.permute.xlu0 %766
  %768 = vrot.lane.b32.xlu0 %v751, 18
  %v769 = vpop.permute.xlu0 %768
  %770 = vrot.lane.b32.xlu0 %v752, 18
  %v771 = vpop.permute.xlu0 %770
  %772 = vrot.lane.b32.xlu0 %v753, 18
  %v773 = vpop.permute.xlu0 %772
  %774 = vrot.lane.b32.xlu0 %v754, 18
  %v775 = vpop.permute.xlu0 %774
  %v776 = vsel %vm101, %v763, %v765
  %v777 = vsel %vm101, %v765, %v767
  %v778 = vsel %vm101, %v767, %v769
  %v779 = vsel %vm101, %v769, %v771
  %v780 = vsel %vm101, %v771, %v773
  %v781 = vsel %vm101, %v773, %v775
  %788 = vst [vmem:[#allocation2 + $0x30] sm:$0xff] %v776
  %789 = vst [vmem:[#allocation2 + $0x38] sm:$0xff] %v777
  %790 = vst [vmem:[#allocation2 + $0x40] sm:$0xff] %v778
  %791 = vst [vmem:[#allocation2 + $0x48] sm:$0xff] %v779
  %792 = vst [vmem:[#allocation2 + $0x50] sm:$0xff] %v780
  %793 = vst [vmem:[#allocation2 + $0x58] sm:$0xff] %v781
  %v794 = vld [vmem:[#allocation3] sm:$0xff]
  %v795 = vld [vmem:[#allocation3 + $0x8] sm:$0xff]
  %v796 = vld [vmem:[#allocation3 + $0x10] sm:$0xff]
  %v797 = vld [vmem:[#allocation3 + $0x18] sm:$0xff]
  %v798 = vld [vmem:[#allocation3 + $0x20] sm:$0xff]
  %v799 = vld [vmem:[#allocation3 + $0x28] sm:$0xff]
  %v800 = vld [vmem:[#allocation3 + $0x30] sm:$0xff]
  %808 = vrot.lane.b32.xlu0 %v794, 17
  %v809 = vpop.permute.xlu0 %808
  %810 = vrot.lane.b32.xlu0 %v795, 17
  %v811 = vpop.permute.xlu0 %810
  %812 = vrot.lane.b32.xlu0 %v796, 17
  %v813 = vpop.permute.xlu0 %812
  %814 = vrot.lane.b32.xlu0 %v797, 17
  %v815 = vpop.permute.xlu0 %814
  %816 = vrot.lane.b32.xlu0 %v798, 17
  %v817 = vpop.permute.xlu0 %816
  %818 = vrot.lane.b32.xlu0 %v799, 17
  %v819 = vpop.permute.xlu0 %818
  %820 = vrot.lane.b32.xlu0 %v800, 17
  %v821 = vpop.permute.xlu0 %820
  %v822 = vsel %vm148, %v809, %v811
  %v823 = vsel %vm148, %v811, %v813
  %v824 = vsel %vm148, %v813, %v815
  %v825 = vsel %vm148, %v815, %v817
  %v826 = vsel %vm148, %v817, %v819
  %v827 = vsel %vm148, %v819, %v821
  %834 = vst [vmem:[#allocation2 + $0x60] sm:$0xff] %v822
  %835 = vst [vmem:[#allocation2 + $0x68] sm:$0xff] %v823
  %836 = vst [vmem:[#allocation2 + $0x70] sm:$0xff] %v824
  %837 = vst [vmem:[#allocation2 + $0x78] sm:$0xff] %v825
  %838 = vst [vmem:[#allocation2 + $0x80] sm:$0xff] %v826
  %839 = vst [vmem:[#allocation2 + $0x88] sm:$0xff] %v827
  %v840 = vld [vmem:[#allocation3] sm:$0xff]
  %v841 = vld [vmem:[#allocation3 + $0x8] sm:$0xff]
  %v842 = vld [vmem:[#allocation3 + $0x10] sm:$0xff]
  %v843 = vld [vmem:[#allocation3 + $0x18] sm:$0xff]
  %v844 = vld [vmem:[#allocation3 + $0x20] sm:$0xff]
  %v845 = vld [vmem:[#allocation3 + $0x28] sm:$0xff]
  %v846 = vld [vmem:[#allocation3 + $0x30] sm:$0xff]
  %854 = vrot.lane.b32.xlu0 %v840, 1
  %v855 = vpop.permute.xlu0 %854
  %856 = vrot.lane.b32.xlu0 %v841, 1
  %v857 = vpop.permute.xlu0 %856
  %858 = vrot.lane.b32.xlu0 %v842, 1
  %v859 = vpop.permute.xlu0 %858
  %860 = vrot.lane.b32.xlu0 %v843, 1
  %v861 = vpop.permute.xlu0 %860
  %862 = vrot.lane.b32.xlu0 %v844, 1
  %v863 = vpop.permute.xlu0 %862
  %864 = vrot.lane.b32.xlu0 %v845, 1
  %v865 = vpop.permute.xlu0 %864
  %866 = vrot.lane.b32.xlu0 %v846, 1
  %v867 = vpop.permute.xlu0 %866
  %v868 = vsel %vm195, %v855, %v857
  %v869 = vsel %vm195, %v857, %v859
  %v870 = vsel %vm195, %v859, %v861
  %v871 = vsel %vm195, %v861, %v863
  %v872 = vsel %vm195, %v863, %v865
  %v873 = vsel %vm195, %v865, %v867
  %880 = vst [vmem:[#allocation2 + $0x90] sm:$0xff] %v868
  %881 = vst [vmem:[#allocation2 + $0x98] sm:$0xff] %v869
  %882 = vst [vmem:[#allocation2 + $0xa0] sm:$0xff] %v870
  %883 = vst [vmem:[#allocation2 + $0xa8] sm:$0xff] %v871
  %884 = vst [vmem:[#allocation2 + $0xb0] sm:$0xff] %v872
  %885 = vst [vmem:[#allocation2 + $0xb8] sm:$0xff] %v873
  %v886 = vld [vmem:[#allocation3 + $0x8] sm:$0xff]
  %v887 = vld [vmem:[#allocation3 + $0x10] sm:$0xff]
  %v888 = vld [vmem:[#allocation3 + $0x18] sm:$0xff]
  %v889 = vld [vmem:[#allocation3 + $0x20] sm:$0xff]
  %v890 = vld [vmem:[#allocation3 + $0x28] sm:$0xff]
  %v891 = vld [vmem:[#allocation3 + $0x30] sm:$0xff]
  %892 = vst [vmem:[#allocation2 + $0xc0] sm:$0xff] %v886
  %893 = vst [vmem:[#allocation2 + $0xc8] sm:$0xff] %v887
  %894 = vst [vmem:[#allocation2 + $0xd0] sm:$0xff] %v888
  %895 = vst [vmem:[#allocation2 + $0xd8] sm:$0xff] %v889
  %896 = vst [vmem:[#allocation2 + $0xe0] sm:$0xff] %v890
  %897 = vst [vmem:[#allocation2 + $0xe8] sm:$0xff] %v891
  %v898 = vld [vmem:[#allocation3 + $0x8] sm:$0xff]
  %v899 = vld [vmem:[#allocation3 + $0x10] sm:$0xff]
  %v900 = vld [vmem:[#allocation3 + $0x18] sm:$0xff]
  %v901 = vld [vmem:[#allocation3 + $0x20] sm:$0xff]
  %v902 = vld [vmem:[#allocation3 + $0x28] sm:$0xff]
  %v903 = vld [vmem:[#allocation3 + $0x30] sm:$0xff]
  %v904 = vld [vmem:[#allocation3 + $0x38] sm:$0xff]
  %912 = vrot.lane.b32.xlu0 %v898, 127
  %v913 = vpop.permute.xlu0 %912
  %914 = vrot.lane.b32.xlu0 %v899, 127
  %v915 = vpop.permute.xlu0 %914
  %916 = vrot.lane.b32.xlu0 %v900, 127
  %v917 = vpop.permute.xlu0 %916
  %918 = vrot.lane.b32.xlu0 %v901, 127
  %v919 = vpop.permute.xlu0 %918
  %920 = vrot.lane.b32.xlu0 %v902, 127
  %v921 = vpop.permute.xlu0 %920
  %922 = vrot.lane.b32.xlu0 %v903, 127
  %v923 = vpop.permute.xlu0 %922
  %924 = vrot.lane.b32.xlu0 %v904, 127
  %v925 = vpop.permute.xlu0 %924
  %v926 = vsel %vm254, %v913, %v915
  %v927 = vsel %vm254, %v915, %v917
  %v928 = vsel %vm254, %v917, %v919
  %v929 = vsel %vm254, %v919, %v921
  %v930 = vsel %vm254, %v921, %v923
  %v931 = vsel %vm254, %v923, %v925
  %938 = vst [vmem:[#allocation2 + $0xf0] sm:$0xff] %v926
  %939 = vst [vmem:[#allocation2 + $0xf8] sm:$0xff] %v927
  %940 = vst [vmem:[#allocation2 + $0x100] sm:$0xff] %v928
  %941 = vst [vmem:[#allocation2 + $0x108] sm:$0xff] %v929
  %942 = vst [vmem:[#allocation2 + $0x110] sm:$0xff] %v930
  %943 = vst [vmem:[#allocation2 + $0x118] sm:$0xff] %v931
  %v944 = vld [vmem:[#allocation3 + $0x8] sm:$0xff]
  %v945 = vld [vmem:[#allocation3 + $0x10] sm:$0xff]
  %v946 = vld [vmem:[#allocation3 + $0x18] sm:$0xff]
  %v947 = vld [vmem:[#allocation3 + $0x20] sm:$0xff]
  %v948 = vld [vmem:[#allocation3 + $0x28] sm:$0xff]
  %v949 = vld [vmem:[#allocation3 + $0x30] sm:$0xff]
  %v950 = vld [vmem:[#allocation3 + $0x38] sm:$0xff]
  %958 = vrot.lane.b32.xlu0 %v944, 111
  %v959 = vpop.permute.xlu0 %958
  %960 = vrot.lane.b32.xlu0 %v945, 111
  %v961 = vpop.permute.xlu0 %960
  %962 = vrot.lane.b32.xlu0 %v946, 111
  %v963 = vpop.permute.xlu0 %962
  %964 = vrot.lane.b32.xlu0 %v947, 111
  %v965 = vpop.permute.xlu0 %964
  %966 = vrot.lane.b32.xlu0 %v948, 111
  %v967 = vpop.permute.xlu0 %966
  %968 = vrot.lane.b32.xlu0 %v949, 111
  %v969 = vpop.permute.xlu0 %968
  %970 = vrot.lane.b32.xlu0 %v950, 111
  %v971 = vpop.permute.xlu0 %970
  %v972 = vsel %vm301, %v959, %v961
  %v973 = vsel %vm301, %v961, %v963
  %v974 = vsel %vm301, %v963, %v965
  %v975 = vsel %vm301, %v965, %v967
  %v976 = vsel %vm301, %v967, %v969
  %v977 = vsel %vm301, %v969, %v971
  %984 = vst [vmem:[#allocation2 + $0x120] sm:$0xff] %v972
  %985 = vst [vmem:[#allocation2 + $0x128] sm:$0xff] %v973
  %986 = vst [vmem:[#allocation2 + $0x130] sm:$0xff] %v974
  %987 = vst [vmem:[#allocation2 + $0x138] sm:$0xff] %v975
  %988 = vst [vmem:[#allocation2 + $0x140] sm:$0xff] %v976
  %989 = vst [vmem:[#allocation2 + $0x148] sm:$0xff] %v977
  %v990 = vld [vmem:[#allocation3 + $0x8] sm:$0xff]
  %v991 = vld [vmem:[#allocation3 + $0x10] sm:$0xff]
  %v992 = vld [vmem:[#allocation3 + $0x18] sm:$0xff]
  %v993 = vld [vmem:[#allocation3 + $0x20] sm:$0xff]
  %v994 = vld [vmem:[#allocation3 + $0x28] sm:$0xff]
  %v995 = vld [vmem:[#allocation3 + $0x30] sm:$0xff]
  %v996 = vld [vmem:[#allocation3 + $0x38] sm:$0xff]
  %1004 = vrot.lane.b32.xlu0 %v990, 110
  %v1005 = vpop.permute.xlu0 %1004
  %1006 = vrot.lane.b32.xlu0 %v991, 110
  %v1007 = vpop.permute.xlu0 %1006
  %1008 = vrot.lane.b32.xlu0 %v992, 110
  %v1009 = vpop.permute.xlu0 %1008
  %1010 = vrot.lane.b32.xlu0 %v993, 110
  %v1011 = vpop.permute.xlu0 %1010
  %1012 = vrot.lane.b32.xlu0 %v994, 110
  %v1013 = vpop.permute.xlu0 %1012
  %1014 = vrot.lane.b32.xlu0 %v995, 110
  %v1015 = vpop.permute.xlu0 %1014
  %1016 = vrot.lane.b32.xlu0 %v996, 110
  %v1017 = vpop.permute.xlu0 %1016
  %v1018 = vsel %vm348, %v1005, %v1007
  %v1019 = vsel %vm348, %v1007, %v1009
  %v1020 = vsel %vm348, %v1009, %v1011
  %v1021 = vsel %vm348, %v1011, %v1013
  %v1022 = vsel %vm348, %v1013, %v1015
  %v1023 = vsel %vm348, %v1015, %v1017
  %1030 = vst [vmem:[#allocation2 + $0x150] sm:$0xff] %v1018
  %1031 = vst [vmem:[#allocation2 + $0x158] sm:$0xff] %v1019
  %1032 = vst [vmem:[#allocation2 + $0x160] sm:$0xff] %v1020
  %1033 = vst [vmem:[#allocation2 + $0x168] sm:$0xff] %v1021
  %1034 = vst [vmem:[#allocation2 + $0x170] sm:$0xff] %v1022
  %1035 = vst [vmem:[#allocation2 + $0x178] sm:$0xff] %v1023
  %v1036 = vld [vmem:[#allocation3 + $0x8] sm:$0xff]
  %v1037 = vld [vmem:[#allocation3 + $0x10] sm:$0xff]
  %v1038 = vld [vmem:[#allocation3 + $0x18] sm:$0xff]
  %v1039 = vld [vmem:[#allocation3 + $0x20] sm:$0xff]
  %v1040 = vld [vmem:[#allocation3 + $0x28] sm:$0xff]
  %v1041 = vld [vmem:[#allocation3 + $0x30] sm:$0xff]
  %v1042 = vld [vmem:[#allocation3 + $0x38] sm:$0xff]
  %1050 = vrot.lane.b32.xlu0 %v1036, 109
  %v1051 = vpop.permute.xlu0 %1050
  %1052 = vrot.lane.b32.xlu0 %v1037, 109
  %v1053 = vpop.permute.xlu0 %1052
  %1054 = vrot.lane.b32.xlu0 %v1038, 109
  %v1055 = vpop.permute.xlu0 %1054
  %1056 = vrot.lane.b32.xlu0 %v1039, 109
  %v1057 = vpop.permute.xlu0 %1056
  %1058 = vrot.lane.b32.xlu0 %v1040, 109
  %v1059 = vpop.permute.xlu0 %1058
  %1060 = vrot.lane.b32.xlu0 %v1041, 109
  %v1061 = vpop.permute.xlu0 %1060
  %1062 = vrot.lane.b32.xlu0 %v1042, 109
  %v1063 = vpop.permute.xlu0 %1062
  %v1064 = vsel %vm395, %v1051, %v1053
  %v1065 = vsel %vm395, %v1053, %v1055
  %v1066 = vsel %vm395, %v1055, %v1057
  %v1067 = vsel %vm395, %v1057, %v1059
  %v1068 = vsel %vm395, %v1059, %v1061
  %v1069 = vsel %vm395, %v1061, %v1063
  %1076 = vst [vmem:[#allocation2 + $0x180] sm:$0xff] %v1064
  %1077 = vst [vmem:[#allocation2 + $0x188] sm:$0xff] %v1065
  %1078 = vst [vmem:[#allocation2 + $0x190] sm:$0xff] %v1066
  %1079 = vst [vmem:[#allocation2 + $0x198] sm:$0xff] %v1067
  %1080 = vst [vmem:[#allocation2 + $0x1a0] sm:$0xff] %v1068
  %1081 = vst [vmem:[#allocation2 + $0x1a8] sm:$0xff] %v1069
  %v1082 = vld [vmem:[%s3] sm:$0xff]
  %v1083 = vld [vmem:[#allocation2] sm:$0xff]
  %v1084 = vld [vmem:[#allocation2 + $0x8] sm:$0xff]
  %v1085 = vld [vmem:[#allocation2 + $0x10] sm:$0xff]
  %v1086 = vld [vmem:[#allocation2 + $0x18] sm:$0xff]
  %v1087 = vld [vmem:[#allocation2 + $0x20] sm:$0xff]
  %v1088 = vld [vmem:[#allocation2 + $0x28] sm:$0xff]
  %v1089 = vld [vmem:[#allocation2 + $0x30] sm:$0xff]
  %v1090 = vld [vmem:[#allocation2 + $0x38] sm:$0xff]
  %v1091 = vld [vmem:[#allocation2 + $0x40] sm:$0xff]
  %v1092 = vld [vmem:[#allocation2 + $0x48] sm:$0xff]
  %v1093 = vld [vmem:[#allocation2 + $0x50] sm:$0xff]
  %v1094 = vld [vmem:[#allocation2 + $0x58] sm:$0xff]
  %v1095 = vld [vmem:[#allocation2 + $0x60] sm:$0xff]
  %v1096 = vld [vmem:[#allocation2 + $0x68] sm:$0xff]
  %v1097 = vld [vmem:[#allocation2 + $0x70] sm:$0xff]
  %v1098 = vld [vmem:[#allocation2 + $0x78] sm:$0xff]
  %v1099 = vld [vmem:[#allocation2 + $0x80] sm:$0xff]
  %v1100 = vld [vmem:[#allocation2 + $0x88] sm:$0xff]
  %v1101 = vld [vmem:[#allocation2 + $0x90] sm:$0xff]
  %v1102 = vld [vmem:[#allocation2 + $0x98] sm:$0xff]
  %v1103 = vld [vmem:[#allocation2 + $0xa0] sm:$0xff]
  %v1104 = vld [vmem:[#allocation2 + $0xa8] sm:$0xff]
  %v1105 = vld [vmem:[#allocation2 + $0xb0] sm:$0xff]
  %v1106 = vld [vmem:[#allocation2 + $0xb8] sm:$0xff]
  %v1107 = vld [vmem:[#allocation2 + $0xc0] sm:$0xff]
  %v1108 = vld [vmem:[#allocation2 + $0xc8] sm:$0xff]
  %v1109 = vld [vmem:[#allocation2 + $0xd0] sm:$0xff]
  %v1110 = vld [vmem:[#allocation2 + $0xd8] sm:$0xff]
  %v1111 = vld [vmem:[#allocation2 + $0xe0] sm:$0xff]
  %v1112 = vld [vmem:[#allocation2 + $0xe8] sm:$0xff]
  %v1113 = vld [vmem:[#allocation2 + $0xf0] sm:$0xff]
  %v1114 = vld [vmem:[#allocation2 + $0xf8] sm:$0xff]
  %v1115 = vld [vmem:[#allocation2 + $0x100] sm:$0xff]
  %v1116 = vld [vmem:[#allocation2 + $0x108] sm:$0xff]
  %v1117 = vld [vmem:[#allocation2 + $0x110] sm:$0xff]
  %v1118 = vld [vmem:[#allocation2 + $0x118] sm:$0xff]
  %v1119 = vld [vmem:[#allocation2 + $0x120] sm:$0xff]
  %v1120 = vld [vmem:[#allocation2 + $0x128] sm:$0xff]
  %v1121 = vld [vmem:[#allocation2 + $0x130] sm:$0xff]
  %v1122 = vld [vmem:[#allocation2 + $0x138] sm:$0xff]
  %v1123 = vld [vmem:[#allocation2 + $0x140] sm:$0xff]
  %v1124 = vld [vmem:[#allocation2 + $0x148] sm:$0xff]
  %v1125 = vld [vmem:[#allocation2 + $0x150] sm:$0xff]
  %v1126 = vld [vmem:[#allocation2 + $0x158] sm:$0xff]
  %v1127 = vld [vmem:[#allocation2 + $0x160] sm:$0xff]
  %v1128 = vld [vmem:[#allocation2 + $0x168] sm:$0xff]
  %v1129 = vld [vmem:[#allocation2 + $0x170] sm:$0xff]
  %v1130 = vld [vmem:[#allocation2 + $0x178] sm:$0xff]
  %v1131 = vld [vmem:[#allocation2 + $0x180] sm:$0xff]
  %v1132 = vld [vmem:[#allocation2 + $0x188] sm:$0xff]
  %v1133 = vld [vmem:[#allocation2 + $0x190] sm:$0xff]
  %v1134 = vld [vmem:[#allocation2 + $0x198] sm:$0xff]
  %v1135 = vld [vmem:[#allocation2 + $0x1a0] sm:$0xff]
  %v1136 = vld [vmem:[#allocation2 + $0x1a8] sm:$0xff]
  %v1138 = vsel %vm469, %v1082, 0
  %1140 = vmatpush.msra.mxu0 0.0
  %1141 = vmatpush.msra.mxu0 0.0
  %1142 = vmatpush.msra.mxu0 0.0
  %1143 = vmatpush.msra.mxu0 0.0
  %1144 = vmatpush.msra.mxu0 0.0
  %1145 = vmatpush.msra.mxu0 0.0
  %1146 = vmatpush.msra.mxu0 0.0
  %1147 = vmatpush.msra.mxu0 %v1131
  %1148 = vmatpush.msra.mxu0 %v1125
  %1149 = vmatpush.msra.mxu0 %v1119
  %1150 = vmatpush.msra.mxu0 %v1113
  %1151 = vmatpush.msra.mxu0 %v1107
  %1152 = vmatpush.msra.mxu0 %v1101
  %1153 = vmatpush.msra.mxu0 %v1095
  %1154 = vmatpush.msra.mxu0 %v1089
  %1155 = vmatpush.msra.mxu0 %v1083
  %1156 = vmatmul.f32.gmra.mxu0 %v1138
  %v1157 = vpop.f32.mrf.mxu0
  %v1158 = vadd.f32 0.0, %v1157
  %1159 = vdwg.mxu0
  %1160 = vmatpush.msra.mxu0 0.0
  %1161 = vmatpush.msra.mxu0 0.0
  %1162 = vmatpush.msra.mxu0 0.0
  %1163 = vmatpush.msra.mxu0 0.0
  %1164 = vmatpush.msra.mxu0 0.0
  %1165 = vmatpush.msra.mxu0 0.0
  %1166 = vmatpush.msra.mxu0 0.0
  %1167 = vmatpush.msra.mxu0 %v1132
  %1168 = vmatpush.msra.mxu0 %v1126
  %1169 = vmatpush.msra.mxu0 %v1120
  %1170 = vmatpush.msra.mxu0 %v1114
  %1171 = vmatpush.msra.mxu0 %v1108
  %1172 = vmatpush.msra.mxu0 %v1102
  %1173 = vmatpush.msra.mxu0 %v1096
  %1174 = vmatpush.msra.mxu0 %v1090
  %1175 = vmatpush.msra.mxu0 %v1084
  %1176 = vmatmul.f32.gmra.mxu0 %v1138
  %v1177 = vpop.f32.mrf.mxu0
  %v1178 = vadd.f32 0.0, %v1177
  %1179 = vdwg.mxu0
  %1180 = vmatpush.msra.mxu0 0.0
  %1181 = vmatpush.msra.mxu0 0.0
  %1182 = vmatpush.msra.mxu0 0.0
  %1183 = vmatpush.msra.mxu0 0.0
  %1184 = vmatpush.msra.mxu0 0.0
  %1185 = vmatpush.msra.mxu0 0.0
  %1186 = vmatpush.msra.mxu0 0.0
  %1187 = vmatpush.msra.mxu0 %v1133
  %1188 = vmatpush.msra.mxu0 %v1127
  %1189 = vmatpush.msra.mxu0 %v1121
  %1190 = vmatpush.msra.mxu0 %v1115
  %1191 = vmatpush.msra.mxu0 %v1109
  %1192 = vmatpush.msra.mxu0 %v1103
  %1193 = vmatpush.msra.mxu0 %v1097
  %1194 = vmatpush.msra.mxu0 %v1091
  %1195 = vmatpush.msra.mxu0 %v1085
  %1196 = vmatmul.f32.gmra.mxu0 %v1138
  %v1197 = vpop.f32.mrf.mxu0
  %v1198 = vadd.f32 0.0, %v1197
  %1199 = vdwg.mxu0
  %1200 = vmatpush.msra.mxu0 0.0
  %1201 = vmatpush.msra.mxu0 0.0
  %1202 = vmatpush.msra.mxu0 0.0
  %1203 = vmatpush.msra.mxu0 0.0
  %1204 = vmatpush.msra.mxu0 0.0
  %1205 = vmatpush.msra.mxu0 0.0
  %1206 = vmatpush.msra.mxu0 0.0
  %1207 = vmatpush.msra.mxu0 %v1134
  %1208 = vmatpush.msra.mxu0 %v1128
  %1209 = vmatpush.msra.mxu0 %v1122
  %1210 = vmatpush.msra.mxu0 %v1116
  %1211 = vmatpush.msra.mxu0 %v1110
  %1212 = vmatpush.msra.mxu0 %v1104
  %1213 = vmatpush.msra.mxu0 %v1098
  %1214 = vmatpush.msra.mxu0 %v1092
  %1215 = vmatpush.msra.mxu0 %v1086
  %1216 = vmatmul.f32.gmra.mxu0 %v1138
  %v1217 = vpop.f32.mrf.mxu0
  %v1218 = vadd.f32 0.0, %v1217
  %1219 = vdwg.mxu0
  %1220 = vmatpush.msra.mxu0 0.0
  %1221 = vmatpush.msra.mxu0 0.0
  %1222 = vmatpush.msra.mxu0 0.0
  %1223 = vmatpush.msra.mxu0 0.0
  %1224 = vmatpush.msra.mxu0 0.0
  %1225 = vmatpush.msra.mxu0 0.0
  %1226 = vmatpush.msra.mxu0 0.0
  %1227 = vmatpush.msra.mxu0 %v1135
  %1228 = vmatpush.msra.mxu0 %v1129
  %1229 = vmatpush.msra.mxu0 %v1123
  %1230 = vmatpush.msra.mxu0 %v1117
  %1231 = vmatpush.msra.mxu0 %v1111
  %1232 = vmatpush.msra.mxu0 %v1105
  %1233 = vmatpush.msra.mxu0 %v1099
  %1234 = vmatpush.msra.mxu0 %v1093
  %1235 = vmatpush.msra.mxu0 %v1087
  %1236 = vmatmul.f32.gmra.mxu0 %v1138
  %v1237 = vpop.f32.mrf.mxu0
  %v1238 = vadd.f32 0.0, %v1237
  %1239 = vdwg.mxu0
  %1240 = vmatpush.msra.mxu0 0.0
  %1241 = vmatpush.msra.mxu0 0.0
  %1242 = vmatpush.msra.mxu0 0.0
  %1243 = vmatpush.msra.mxu0 0.0
  %1244 = vmatpush.msra.mxu0 0.0
  %1245 = vmatpush.msra.mxu0 0.0
  %1246 = vmatpush.msra.mxu0 0.0
  %1247 = vmatpush.msra.mxu0 %v1136
  %1248 = vmatpush.msra.mxu0 %v1130
  %1249 = vmatpush.msra.mxu0 %v1124
  %1250 = vmatpush.msra.mxu0 %v1118
  %1251 = vmatpush.msra.mxu0 %v1112
  %1252 = vmatpush.msra.mxu0 %v1106
  %1253 = vmatpush.msra.mxu0 %v1100
  %1254 = vmatpush.msra.mxu0 %v1094
  %1255 = vmatpush.msra.mxu0 %v1088
  %1256 = vmatmul.f32.gmra.mxu0 %v1138
  %v1257 = vpop.f32.mrf.mxu0
  %v1258 = vadd.f32 0.0, %v1257
  %1259 = vdwg.mxu0
  %v1260 = vmul.f32 %v1158, %v594
  %v1261 = vmul.f32 %v1178, %v595
  %v1262 = vmul.f32 %v1198, %v596
  %v1263 = vmul.f32 %v1218, %v597
  %v1264 = vmul.f32 %v1238, %v598
  %v1265 = vmul.f32 %v1258, %v599
  %v1266 = vadd.f32 %v1260, %v1261
  %v1267 = vadd.f32 %v1266, %v1262
  %v1268 = vadd.f32 %v1267, %v1263
  %v1269 = vadd.f32 %v1268, %v1264
  %v1270 = vadd.f32 %v1269, %v1265
  %1271 = vadd.xlane.f32.xlu0 %v1270
  %v1272 = vpop.xlane.xlu0 %1271
  %v1273 = vmul.f32 %v1272, 0.001953125
  %v1274 = vsub.f32 %v1158, %v1273
  %v1275 = vsub.f32 %v1178, %v1273
  %v1276 = vsub.f32 %v1198, %v1273
  %v1277 = vsub.f32 %v1218, %v1273
  %v1278 = vsub.f32 %v1238, %v1273
  %v1279 = vsub.f32 %v1258, %v1273
  %v1280 = vmul.f32 %v1274, %v1274
  %v1281 = vmul.f32 %v1275, %v1275
  %v1282 = vmul.f32 %v1276, %v1276
  %v1283 = vmul.f32 %v1277, %v1277
  %v1284 = vmul.f32 %v1278, %v1278
  %v1285 = vmul.f32 %v1279, %v1279
  %v1286 = vmul.f32 %v1280, %v594
  %v1287 = vmul.f32 %v1281, %v595
  %v1288 = vmul.f32 %v1282, %v596
  %v1289 = vmul.f32 %v1283, %v597
  %v1290 = vmul.f32 %v1284, %v598
  %v1291 = vmul.f32 %v1285, %v599
  %v1292 = vadd.f32 %v1286, %v1287
  %v1293 = vadd.f32 %v1292, %v1288
  %v1294 = vadd.f32 %v1293, %v1289
  %v1295 = vadd.f32 %v1294, %v1290
  %v1296 = vadd.f32 %v1295, %v1291
  %1297 = vadd.xlane.f32.xlu0 %v1296
  %v1298 = vpop.xlane.xlu0 %1297
  %v1299 = vmul.f32 %v1298, 0.001953125
  %v1300 = vadd.f32 %v1299, 1e-05
  %v1301 = vrsqrt.pop %v1300
  %v1302 = vmul.f32 %v1301, %v1300
  %v1303 = vmul.f32 %v1302, %v1301
  %v1304 = vmul.f32 0.5, %v1303
  %v1305 = vsub.f32 1.5, %v1304
  %v1306 = vmul.f32 %v1301, %v1305
  %vm1307 = vweird.f32 %v1300
  %vm1308 = vweird.f32 %v1301
  %vm1309 = vmor %vm1307, %vm1308
  %v1310 = vsel %vm1309, %v1301, %v1306
  %v1311 = vmul.f32 %v24, %v1310
  %v1312 = vmul.f32 %v1273, %v1311
  %v1313 = vsub.f32 %v25, %v1312
  %1315 = vset.pattern.permute.xlu0 0
  %1316 = vperm.xlu0 %1315, %v1311
  %v1317 = vpop.permute.xlu0 %1316
  %v1319 = vmul.f32 %v1158, %v1317
  %v1320 = vmul.f32 %v1178, %v1317
  %v1321 = vmul.f32 %v1198, %v1317
  %v1322 = vmul.f32 %v1218, %v1317
  %v1323 = vmul.f32 %v1238, %v1317
  %v1324 = vmul.f32 %v1258, %v1317
  %1326 = vset.pattern.permute.xlu0 0
  %1327 = vperm.xlu0 %1326, %v1313
  %v1328 = vpop.permute.xlu0 %1327
  %v1330 = vadd.f32 %v1319, %v1328
  %v1331 = vadd.f32 %v1320, %v1328
  %v1332 = vadd.f32 %v1321, %v1328
  %v1333 = vadd.f32 %v1322, %v1328
  %v1334 = vadd.f32 %v1323, %v1328
  %v1335 = vadd.f32 %v1324, %v1328
  %v1336 = vld [vmem:[%s0 + $0x8] sm:$0xff]
  %v1337 = vld [vmem:[%s0 + $0x10] sm:$0xff]
  %v1338 = vld [vmem:[%s0 + $0x18] sm:$0xff]
  %v1339 = vld [vmem:[%s0 + $0x20] sm:$0xff]
  %v1340 = vld [vmem:[%s0 + $0x28] sm:$0xff]
  %v1341 = vld [vmem:[%s0 + $0x30] sm:$0xff]
  %v1342 = vadd.f32 %v1330, %v1336
  %v1343 = vadd.f32 %v1331, %v1337
  %v1344 = vadd.f32 %v1332, %v1338
  %v1345 = vadd.f32 %v1333, %v1339
  %v1346 = vadd.f32 %v1334, %v1340
  %v1347 = vadd.f32 %v1335, %v1341
  %v1348 = vmax.f32 %v1342, 0.0
  %v1349 = vmax.f32 %v1343, 0.0
  %v1350 = vmax.f32 %v1344, 0.0
  %v1351 = vmax.f32 %v1345, 0.0
  %v1352 = vmax.f32 %v1346, 0.0
  %v1353 = vmax.f32 %v1347, 0.0
  %1354 = vst [vmem:[%s6] sm:$0xff] %v1348
  %1355 = vst [vmem:[%s6 + $0x8] sm:$0xff] %v1349
  %1356 = vst [vmem:[%s6 + $0x10] sm:$0xff] %v1350
  %1357 = vst [vmem:[%s6 + $0x18] sm:$0xff] %v1351
  %1358 = vst [vmem:[%s6 + $0x20] sm:$0xff] %v1352
  %1359 = vst [vmem:[%s6 + $0x28] sm:$0xff] %v1353
  // Predicated region
  $region26: #{block_forward.1} parent=0 // pred_check
    _
  $region27: #{block_forward.1} parent=0 // pred_check_branch
    %1361 = sbr.rel (0) target = $region29
  $region28: #{block_forward.1} parent=0 // pred_region
    _
  $region29: #{block_forward.1} parent=0 // pred_fallthru
    _
  // Predicated region
  $region30: #{block_forward.1} parent=0 // pred_check
    _
  $region31: #{block_forward.1} parent=0 // pred_check_branch
    %1363 = sbr.rel (0) target = $region33
  $region32: #{block_forward.1} parent=0 // pred_region
    _
  $region33: #{block_forward.1} parent=0 // pred_fallthru
    _

</llo_original>
